<compile_context>
chip_gen: v7x
topology: tpu7x:2x2x1
jax: 0.10.0
libtpu: 0.0.40
codegen_flags: <defaults>
</compile_context>

<pallas_src>
import jax
import jax.numpy as jnp
from jax.experimental import pallas as pl
from jax.experimental.pallas import tpu as pltpu


def _round_up(a, b):
    return (a + b - 1) // b * b


def _choose_tile(n, step, cap, prefer_min_blocks=1):
    """Largest multiple of `step` that divides n and is <= cap.

    Prefers tiles that leave at least `prefer_min_blocks` blocks (so the row
    axis can still shard across TensorCores on v7x)."""
    divs = [d for d in range(step, min(cap, n) + 1, step) if n % d == 0]
    if not divs:
        return n  # block == full dim (always legal for BlockSpec)
    preferred = [d for d in divs if n // d >= prefer_min_blocks]
    return max(preferred) if preferred else max(divs)


def _make_gin_kernel(tm, tk, f_in):
    def kernel(eps_ref, adj_ref, x_ref, w1_ref, b1_ref, w2_ref, b2_ref,
               out_ref, acc_ref):
        i = pl.program_id(0)
        k = pl.program_id(1)

        @pl.when(k == 0)
        def _init():
            acc_ref[...] = jnp.zeros_like(acc_ref)

        # Dominant work: neighborhood sum on the MXU, bf16 x bf16 -> f32.
        # x_ref is the resident hi/lo-split feature matrix (N, 2*f_in); slice
        # the k-th reduction chunk in VMEM instead of re-streaming it from HBM.
        row0 = pl.multiple_of(k * tk, tk)
        xk = x_ref[pl.ds(row0, tk), :]
        acc_ref[...] += jnp.dot(adj_ref[...], xk,
                                preferred_element_type=jnp.float32)

        # Finalize: recombine hi/lo, self term, MLP, lane-dense 128-wide store.
        @pl.when(k == pl.num_programs(1) - 1)
        def _finalize():
            eps = eps_ref[0]                                  # scalar from SMEM
            acc = acc_ref[...]                                # (tm, 2*f_in) f32
            agg = acc[:, :f_in] + acc[:, f_in:]               # hi + lo partial sums

            r0 = pl.multiple_of(i * tm, tm)
            xs = x_ref[pl.ds(r0, tm), :].astype(jnp.float32)  # (tm, 2*f_in)
            x_self = xs[:, :f_in] + xs[:, f_in:]              # ~f32-accurate x

            h = (1.0 + eps) * x_self + agg                    # (tm, f_in) f32
            h1 = jnp.dot(h, w1_ref[...],
                         preferred_element_type=jnp.float32) + b1_ref[...]
            h1 = jnp.maximum(h1, 0.0)
            out = jnp.dot(h1, w2_ref[...],
                          preferred_element_type=jnp.float32) + b2_ref[...]
            out_ref[...] = out.astype(out_ref.dtype)

    return kernel


def gin_layer(x, adj, eps, w1, b1, w2, b2, *, tm_max=512, tk_max=1024):
    """x: (N, F_in) f32, adj: (N, N) (bf16 preferred; 0/1 edges are exact),
    w1: (F_in, F_out), b1: (F_out,), w2: (F_out, F_out), b2: (F_out,).
    Returns (N, F_out) float32."""
    n, f_in = x.shape
    f_out = w1.shape[1]
    f_pad = _round_up(f_out, 128)          # lane-dense output / MLP width

    n_pad = _round_up(n, 128)

    x = x.astype(jnp.float32)
    if adj.dtype != jnp.bfloat16:
        # Callers should store adjacency in bf16 once (exact for 0/1 edges);
        # this cast is only a fallback and costs an extra N^2 HBM pass.
        adj = adj.astype(jnp.bfloat16)
    if n_pad != n:
        # TODO(synk): mask the ragged edge in-kernel instead of padding adj.
        x = jnp.pad(x, ((0, n_pad - n), (0, 0)))
        adj = jnp.pad(adj, ((0, n_pad - n), (0, n_pad - n)))

    # hi/lo bf16 split of x so the dominant matmul runs bf16 x bf16 on the MXU
    # while keeping ~f32 accuracy of the aggregation (error ~2^-17 relative).
    x_hi = x.astype(jnp.bfloat16)
    x_lo = (x - x_hi.astype(jnp.float32)).astype(jnp.bfloat16)
    x_cat = jnp.concatenate([x_hi, x_lo], axis=1)            # (n_pad, 2*f_in)

    # Zero-pad the MLP so its lane (last) dim is a multiple of 128.
    w1p = jnp.zeros((f_in, f_pad), jnp.float32).at[:, :f_out].set(
        w1.astype(jnp.float32))
    b1p = jnp.zeros((1, f_pad), jnp.float32).at[:, :f_out].set(
        jnp.asarray(b1, jnp.float32).reshape(1, -1))
    w2p = jnp.zeros((f_pad, f_pad), jnp.float32).at[:f_out, :f_out].set(
        w2.astype(jnp.float32))
    b2p = jnp.zeros((1, f_pad), jnp.float32).at[:, :f_out].set(
        jnp.asarray(b2, jnp.float32).reshape(1, -1))

    eps_arr = jnp.asarray(eps, jnp.float32).reshape((1,))

    # Tile selection: tk (lane axis of adj) multiple of 128, tm multiple of 8,
    # both dividing n_pad; tm prefers >= 2 row blocks for v7x megacore.
    tk = _choose_tile(n_pad, 128, tk_max)
    tm = _choose_tile(n_pad, 8, tm_max, prefer_min_blocks=2)
    grid = (n_pad // tm, n_pad // tk)

    out = pl.pallas_call(
        _make_gin_kernel(tm, tk, f_in),
        out_shape=jax.ShapeDtypeStruct((n_pad, f_pad), jnp.float32),
        grid_spec=pltpu.PrefetchScalarGridSpec(
            num_scalar_prefetch=0,
            grid=grid,
            in_specs=[
                pl.BlockSpec(memory_space=pltpu.SMEM),                  # eps scalar
                pl.BlockSpec((tm, tk), lambda i, k: (i, k)),            # adj tile (streamed, bf16)
                pl.BlockSpec((n_pad, 2 * f_in), lambda i, k: (0, 0)),   # resident hi/lo x
                pl.BlockSpec((f_in, f_pad), lambda i, k: (0, 0)),       # W1 (resident)
                pl.BlockSpec((1, f_pad), lambda i, k: (0, 0)),          # b1 (resident)
                pl.BlockSpec((f_pad, f_pad), lambda i, k: (0, 0)),      # W2 (resident)
                pl.BlockSpec((1, f_pad), lambda i, k: (0, 0)),          # b2 (resident)
            ],
            out_specs=pl.BlockSpec((tm, f_pad), lambda i, k: (i, 0)),
            scratch_shapes=[pltpu.VMEM((tm, 2 * f_in), jnp.float32)],   # hi/lo agg accumulator
        ),
        compiler_params=pltpu.CompilerParams(
            dimension_semantics=("parallel", "arbitrary"),
            vmem_limit_bytes=32 * 1024 * 1024,
        ),
    )(eps_arr, adj, x_cat, w1p, b1p, w2p, b2p)

    return out[:n, :f_out]


if __name__ == "__main__":
    num_nodes = 384          # multiple of 128 -> no adjacency padding needed
    in_features = 64
    out_features = 32
    eps = 0.3

    key = jax.random.PRNGKey(0)
    k_x, k_adj, k_w1, k_b1, k_w2, k_b2 = jax.random.split(key, 6)

    x = jax.random.normal(k_x, (num_nodes, in_features), dtype=jnp.float32)
    # Symmetric 0/1 adjacency with no self loops.
    a = (jax.random.uniform(k_adj, (num_nodes, num_nodes)) < 0.1).astype(jnp.float32)
    adj_f32 = jnp.triu(a, 1)
    adj_f32 = adj_f32 + adj_f32.T
    # Store adjacency once in bf16 (exact for 0/1 edges) so the kernel's
    # dominant N^2 stream is narrow without a per-call cast pass.
    adj = adj_f32.astype(jnp.bfloat16)

    # Parameters, stored transposed vs. PyTorch: y = x @ W + b.
    w1 = jax.random.normal(k_w1, (in_features, out_features), jnp.float32) * 0.1
    b1 = jax.random.normal(k_b1, (out_features,), jnp.float32) * 0.1
    w2 = jax.random.normal(k_w2, (out_features, out_features), jnp.float32) * 0.1
    b2 = jax.random.normal(k_b2, (out_features,), jnp.float32) * 0.1

    # Pure-JAX reference.
    h_ref = (1.0 + eps) * x + adj_f32 @ x
    ref = jnp.maximum(h_ref @ w1 + b1[None, :], 0.0) @ w2 + b2[None, :]

    # Default (large-tile) path: tk = N (single reduction step), 2 row tiles.
    out = jax.block_until_ready(gin_layer(x, adj, eps, w1, b1, w2, b2))
    assert out.shape == (num_nodes, out_features)
    err = float(jnp.max(jnp.abs(out - ref)))
    assert jnp.allclose(out, ref, atol=1e-3, rtol=1e-3), f"max abs err = {err}"

    # Small-tile path: exercises the multi-step reduction accumulation.
    out2 = jax.block_until_ready(
        gin_layer(x, adj, eps, w1, b1, w2, b2, tm_max=128, tk_max=128))
    err2 = float(jnp.max(jnp.abs(out2 - ref)))
    assert jnp.allclose(out2, ref, atol=1e-3, rtol=1e-3), f"max abs err = {err2}"

    print("KERNEL_OK")
</pallas_src>

<mosaic_0001>
module attributes {stable_mosaic.version = 11 : i64} {
  func.func @kernel(%arg0: i32, %arg1: i32, %arg2: memref<1xf32, #tpu.memory_space<smem>>, %arg3: memref<192x384xbf16, #tpu.memory_space<vmem>>, %arg4: memref<384x128xbf16, #tpu.memory_space<vmem>>, %arg5: memref<64x128xf32, #tpu.memory_space<vmem>>, %arg6: memref<1x128xf32, #tpu.memory_space<vmem>>, %arg7: memref<128x128xf32, #tpu.memory_space<vmem>>, %arg8: memref<1x128xf32, #tpu.memory_space<vmem>>, %arg9: memref<192x128xf32, #tpu.memory_space<vmem>>, %arg10: memref<192x128xf32, #tpu.memory_space<vmem>>) attributes {dimension_semantics = [#tpu.dimension_semantics<parallel>, #tpu.dimension_semantics<arbitrary>], iteration_bounds = array<i64: 2, 1>, scalar_prefetch = 0 : i64, scratch_operands = 1 : i64, tpu.core_type = #tpu.core_type<tc>, window_params = [{transform_indices = @transform_0, window_bounds = array<i64: 1>}, {transform_indices = @transform_1, window_bounds = array<i64: 192, 384>}, {pipeline_mode = #tpu.pipeline_mode<synchronous>, transform_indices = @transform_2, window_bounds = array<i64: 384, 128>}, {pipeline_mode = #tpu.pipeline_mode<synchronous>, transform_indices = @transform_3, window_bounds = array<i64: 64, 128>}, {pipeline_mode = #tpu.pipeline_mode<synchronous>, transform_indices = @transform_4, window_bounds = array<i64: 1, 128>}, {pipeline_mode = #tpu.pipeline_mode<synchronous>, transform_indices = @transform_5, window_bounds = array<i64: 128, 128>}, {pipeline_mode = #tpu.pipeline_mode<synchronous>, transform_indices = @transform_6, window_bounds = array<i64: 1, 128>}, {transform_indices = @transform_7, window_bounds = array<i64: 192, 128>}]} {
    %c0_i32 = arith.constant 0 : i32
    %0 = arith.cmpi eq, %arg1, %c0_i32 : i32
    %1 = arith.extui %0 : i1 to i32
    %c0_i32_0 = arith.constant 0 : i32
    %2 = arith.cmpi ne, %1, %c0_i32_0 : i32
    scf.if %2 {
      %cst_9 = arith.constant 0.000000e+00 : f32
      %15 = vector.broadcast %cst_9 : f32 to vector<192x128xf32>
      %c0_10 = arith.constant 0 : index
      %c0_11 = arith.constant 0 : index
      %16 = vector.load %arg10[%c0_10, %c0_11] : memref<192x128xf32, #tpu.memory_space<vmem>>, vector<192x128xf32>
      tpu.vector_store %arg10[%c0_10, %c0_11], %15 {strides = array<i32>} : memref<192x128xf32, #tpu.memory_space<vmem>>, vector<192x128xf32>,
    } else {
    }
    %c384_i32 = arith.constant 384 : i32
    %3 = arith.muli %arg1, %c384_i32 : i32
    %4 = tpu.assume_multiple %3, 384 : i32
    %5 = arith.index_cast %4 : i32 to index
    %c0 = arith.constant 0 : index
    %6 = vector.load %arg4[%5, %c0] : memref<384x128xbf16, #tpu.memory_space<vmem>>, vector<384x128xbf16>
    %c0_1 = arith.constant 0 : index
    %c0_2 = arith.constant 0 : index
    %7 = vector.load %arg10[%c0_1, %c0_2] : memref<192x128xf32, #tpu.memory_space<vmem>>, vector<192x128xf32>
    %c0_3 = arith.constant 0 : index
    %c0_4 = arith.constant 0 : index
    %8 = vector.load %arg3[%c0_3, %c0_4] : memref<192x384xbf16, #tpu.memory_space<vmem>>, vector<192x384xbf16>
    %cst = arith.constant dense<0.000000e+00> : vector<192x128xf32>
    %9 = tpu.matmul %8, %6, %cst {dimension_numbers = #tpu.dot_dimension_numbers<[1], [0], [0], [1], [0, 0, 1, 1], [], []>} : vector<192x384xbf16>, vector<384x128xbf16>, vector<192x128xf32> -> vector<192x128xf32>
    %10 = arith.addf %7, %9 : vector<192x128xf32>
    %c0_5 = arith.constant 0 : index
    %c0_6 = arith.constant 0 : index
    %11 = vector.load %arg10[%c0_5, %c0_6] : memref<192x128xf32, #tpu.memory_space<vmem>>, vector<192x128xf32>
    tpu.vector_store %arg10[%c0_5, %c0_6], %10 {strides = array<i32>} : memref<192x128xf32, #tpu.memory_space<vmem>>, vector<192x128xf32>,
    %c0_i32_7 = arith.constant 0 : i32
    %12 = arith.cmpi eq, %arg1, %c0_i32_7 : i32
    %13 = arith.extui %12 : i1 to i32
    %c0_i32_8 = arith.constant 0 : i32
    %14 = arith.cmpi ne, %13, %c0_i32_8 : i32
    scf.if %14 {
      %c0_9 = arith.constant 0 : index
      %15 = memref.load %arg2[%c0_9] : memref<1xf32, #tpu.memory_space<smem>>
      %c0_10 = arith.constant 0 : index
      %c0_11 = arith.constant 0 : index
      %16 = vector.load %arg10[%c0_10, %c0_11] : memref<192x128xf32, #tpu.memory_space<vmem>>, vector<192x128xf32>
      %17 = vector.extract_strided_slice %16 {offsets = [0, 0], sizes = [192, 64], strides = [1, 1]} : vector<192x128xf32> to vector<192x64xf32>
      %18 = vector.extract_strided_slice %16 {offsets = [0, 64], sizes = [192, 64], strides = [1, 1]} : vector<192x128xf32> to vector<192x64xf32>
      %19 = arith.addf %17, %18 : vector<192x64xf32>
      %c192_i32 = arith.constant 192 : i32
      %20 = arith.muli %arg0, %c192_i32 : i32
      %21 = tpu.assume_multiple %20, 192 : i32
      %22 = arith.index_cast %21 : i32 to index
      %c0_12 = arith.constant 0 : index
      %23 = vector.load %arg4[%22, %c0_12] : memref<384x128xbf16, #tpu.memory_space<vmem>>, vector<192x128xbf16>
      %24 = arith.extf %23 : vector<192x128xbf16> to vector<192x128xf32>
      %25 = vector.extract_strided_slice %24 {offsets = [0, 0], sizes = [192, 64], strides = [1, 1]} : vector<192x128xf32> to vector<192x64xf32>
      %26 = vector.extract_strided_slice %24 {offsets = [0, 64], sizes = [192, 64], strides = [1, 1]} : vector<192x128xf32> to vector<192x64xf32>
      %27 = arith.addf %25, %26 : vector<192x64xf32>
      %cst_13 = arith.constant 1.000000e+00 : f32
      %28 = arith.addf %cst_13, %15 : f32
      %29 = vector.broadcast %28 : f32 to vector<192x64xf32>
      %30 = arith.mulf %29, %27 : vector<192x64xf32>
      %31 = arith.addf %30, %19 : vector<192x64xf32>
      %c0_14 = arith.constant 0 : index
      %c0_15 = arith.constant 0 : index
      %32 = vector.load %arg5[%c0_14, %c0_15] : memref<64x128xf32, #tpu.memory_space<vmem>>, vector<64x128xf32>
      %cst_16 = arith.constant dense<0.000000e+00> : vector<192x128xf32>
      %33 = tpu.matmul %31, %32, %cst_16 {dimension_numbers = #tpu.dot_dimension_numbers<[1], [0], [0], [1], [0, 0, 1, 1], [], []>} : vector<192x64xf32>, vector<64x128xf32>, vector<192x128xf32> -> vector<192x128xf32>
      %c0_17 = arith.constant 0 : index
      %c0_18 = arith.constant 0 : index
      %34 = vector.load %arg6[%c0_17, %c0_18] : memref<1x128xf32, #tpu.memory_space<vmem>>, vector<1x128xf32>
      %35 = vector.broadcast %34 : vector<1x128xf32> to vector<192x128xf32>
      %36 = arith.addf %33, %35 : vector<192x128xf32>
      %cst_19 = arith.constant 0.000000e+00 : f32
      %37 = vector.broadcast %cst_19 : f32 to vector<192x128xf32>
      %38 = arith.maximumf %36, %37 : vector<192x128xf32>
      %c0_20 = arith.constant 0 : index
      %c0_21 = arith.constant 0 : index
      %39 = vector.load %arg7[%c0_20, %c0_21] : memref<128x128xf32, #tpu.memory_space<vmem>>, vector<128x128xf32>
      %cst_22 = arith.constant dense<0.000000e+00> : vector<192x128xf32>
      %40 = tpu.matmul %38, %39, %cst_22 {dimension_numbers = #tpu.dot_dimension_numbers<[1], [0], [0], [1], [0, 0, 1, 1], [], []>} : vector<192x128xf32>, vector<128x128xf32>, vector<192x128xf32> -> vector<192x128xf32>
      %c0_23 = arith.constant 0 : index
      %c0_24 = arith.constant 0 : index
      %41 = vector.load %arg8[%c0_23, %c0_24] : memref<1x128xf32, #tpu.memory_space<vmem>>, vector<1x128xf32>
      %42 = vector.broadcast %41 : vector<1x128xf32> to vector<192x128xf32>
      %43 = arith.addf %40, %42 : vector<192x128xf32>
      %c0_25 = arith.constant 0 : index
      %c0_26 = arith.constant 0 : index
      %44 = vector.load %arg9[%c0_25, %c0_26] : memref<192x128xf32, #tpu.memory_space<vmem>>, vector<192x128xf32>
      tpu.vector_store %arg9[%c0_25, %c0_26], %43 {strides = array<i32>} : memref<192x128xf32, #tpu.memory_space<vmem>>, vector<192x128xf32>,
    } else {
    }
    return
  }
  func.func @transform_0(%arg0: i32, %arg1: i32) -> i32 {
    %c0_i32 = arith.constant 0 : i32
    %c0_i32_0 = arith.constant 0 : i32
    return %c0_i32 : i32
  }
  func.func @transform_1(%arg0: i32, %arg1: i32) -> (i32, i32) {
    %c0_i32 = arith.constant 0 : i32
    return %arg0, %arg1 : i32, i32
  }
  func.func @transform_2(%arg0: i32, %arg1: i32) -> (i32, i32) {
    %c0_i32 = arith.constant 0 : i32
    %c0_i32_0 = arith.constant 0 : i32
    %c0_i32_1 = arith.constant 0 : i32
    return %c0_i32, %c0_i32_0 : i32, i32
  }
  func.func @transform_3(%arg0: i32, %arg1: i32) -> (i32, i32) {
    %c0_i32 = arith.constant 0 : i32
    %c0_i32_0 = arith.constant 0 : i32
    %c0_i32_1 = arith.constant 0 : i32
    return %c0_i32, %c0_i32_0 : i32, i32
  }
  func.func @transform_4(%arg0: i32, %arg1: i32) -> (i32, i32) {
    %c0_i32 = arith.constant 0 : i32
    %c0_i32_0 = arith.constant 0 : i32
    %c0_i32_1 = arith.constant 0 : i32
    return %c0_i32, %c0_i32_0 : i32, i32
  }
  func.func @transform_5(%arg0: i32, %arg1: i32) -> (i32, i32) {
    %c0_i32 = arith.constant 0 : i32
    %c0_i32_0 = arith.constant 0 : i32
    %c0_i32_1 = arith.constant 0 : i32
    return %c0_i32, %c0_i32_0 : i32, i32
  }
  func.func @transform_6(%arg0: i32, %arg1: i32) -> (i32, i32) {
    %c0_i32 = arith.constant 0 : i32
    %c0_i32_0 = arith.constant 0 : i32
    %c0_i32_1 = arith.constant 0 : i32
    return %c0_i32, %c0_i32_0 : i32, i32
  }
  func.func @transform_7(%arg0: i32, %arg1: i32) -> (i32, i32) {
    %c0_i32 = arith.constant 0 : i32
    %c0_i32_0 = arith.constant 0 : i32
    return %arg0, %c0_i32 : i32, i32
  }
}

</mosaic_0001>

<llo_original>
// kernel: tpu_custom_call.1
$region0: #{tpu_custom_call.1}
  #allocation0 [shape = 'u32[]', space=smem, size = 0x4, offset = 0x4, fixed_abs, tag = 'smem constant byte address 0x4 - core index']
  #allocation1 [shape = 'u32[144,128]{1,0:T(1,128)}', space=vmem, size = 0x12000, scoped, tag = 'internal scratch']
  #allocation2 [shape = 'f32[192,128]{1,0:T(8,128)}', space=vmem, size = 0x18000, scoped, tag = 'scratch operand']
  #allocation3 [shape = 'f32[1]{0:T(128)S(6)}', space=smem, size = 0x200, scoped, tag = 'scoped memory for tpu_custom_call.1']
  %s0 = inlined_call_operand.<no memory space> [shape: f32[1], index: 0, kind: input, shape index: {}]
  %s1 = inlined_call_operand.hbm [shape: bf16[384,384], index: 1, kind: input, shape index: {}]
  %s2 = inlined_call_operand.hbm [shape: bf16[384,128], index: 2, kind: input, shape index: {}]
  %s3 = inlined_call_operand.hbm [shape: f32[64,128], index: 3, kind: input, shape index: {}]
  %s4 = inlined_call_operand.vmem [shape: f32[1,128], index: 4, kind: input, shape index: {}]
  %s5 = inlined_call_operand.hbm [shape: f32[128,128], index: 5, kind: input, shape index: {}]
  %s6 = inlined_call_operand.vmem [shape: f32[1,128], index: 6, kind: input, shape index: {}]
  %s7 = inlined_call_operand.hbm [shape: f32[384,128], index: 7, kind: output, shape index: {}]
  %s8 = sld [smem:[#allocation0]]
  $region85: #{tpu_custom_call.1} parent=0
    _
  %s10 = ssub.s32 1, %s8
  %s11 = scalar_select 0, %s10, %s8
  %12 = sst [smem:[#allocation3]] %s0
  $region1: #{tpu_custom_call.1} parent=0
    #allocation4 [shape = 'u8[294912]{0}', space=vmem, size = 0x48000, scoped, tag = 'input window, operand 1']
    #allocation5 [shape = 's32[2]{0}', space=sflag, size = 0x8, scoped, tag = 'scoped memory for tpu_custom_call.1']
    #allocation6 [shape = 's32[2]{0}', space=sflag, size = 0x8, scoped, tag = 'scoped memory for tpu_custom_call.1']
    #allocation7 [shape = 'u8[98304]{0}', space=vmem, size = 0x18000, scoped, tag = 'input window, operand 2, single buffered']
    #allocation8 [shape = 's32[1]{0}', space=sflag, size = 0x4, scoped, tag = 'scoped memory for tpu_custom_call.1']
    #allocation9 [shape = 'u8[32768]{0}', space=vmem, size = 0x8000, scoped, tag = 'input window, operand 3, single buffered']
    #allocation10 [shape = 'u8[65536]{0}', space=vmem, size = 0x10000, scoped, tag = 'input window, operand 5, single buffered']
    #allocation11 [shape = 's32[1]{0}', space=sflag, size = 0x4, scoped, tag = 'scoped memory for tpu_custom_call.1']
    #allocation12 [shape = 'u8[196608]{0}', space=vmem, size = 0x30000, scoped, tag = 'output window, operand 0']
    %13 = vsyncpa [#allocation5], 0
    %s14 = scalar_lea.sflag [#allocation5], 1
    %15 = vsyncpa %s14, 0
    %16 = vsyncpa [#allocation8], 0
    %17 = vsyncpa [#allocation11], 0
    %18 = vsyncpa [#allocation6], 0
    %s19 = scalar_lea.sflag [#allocation6], 1
    %20 = vsyncpa %s19, 0
    loop: start=0, step=1, limit=4
    $region2: #{tpu_custom_call.1} parent=1 // loop_pre_header
      _
    $region3: #{tpu_custom_call.1} parent=1 // loop_header
      %s22 = sphi 0, %s26
      %p23 = scmp.ge.s32.totalorder %s22, 4
      %s29 = sphi 0, %s41
      %s30 = sphi 0, %s37
      %s31 = sphi 0, %s29
      %s32 = sphi 0, %s30
      %s33 = sphi 0, %s31
      %s34 = sphi 0, %s32
      %s42 = sphi 0, %s42
      %s44 = sphi 0, %s42
      %s45 = sphi 0, %s44
      %s59 = sphi 0, %s45
      %s67 = sphi 0, %s69
      %s70 = sphi 0, %s67
      %s71 = sphi 0, %s70
      %s87 = sphi 0, %s71
      %s91 = sphi 0, %s91
      %s93 = sphi 0, %s91
      %s94 = sphi 0, %s93
      %s108 = sphi 0, %s94
      %s112 = sphi 0, %s112
      %s114 = sphi 0, %s112
      %s115 = sphi 0, %s114
      %s129 = sphi 0, %s115
      %s133 = sphi 0, %s133
      %s135 = sphi 0, %s133
      %s136 = sphi 0, %s135
      %s150 = sphi 0, %s136
      %s154 = sphi 0, %s154
      %s156 = sphi 0, %s154
      %s157 = sphi 0, %s156
      %s171 = sphi 0, %s157
      %s175 = sphi 0, %s175
      %s177 = sphi 0, %s175
      %s178 = sphi 0, %s177
      %s192 = sphi 0, %s178
      %s198 = sphi 0, %s200
      %s201 = sphi 0, %s198
      %s202 = sphi 0, %s201
      %s218 = sphi 0, %s202
    $region4: #{tpu_custom_call.1} parent=1 // loop_header_branch
      %25 = sbr.rel (%p23) target = $region8
    $region5: #{tpu_custom_call.1} parent=1 // loop_body
      %s27 = ssub.s32 %s22, 1
      %s28 = ssub.s32 %s22, 2
      %s35 = sadd.s32 1, %s30
      %p36 = scmp.ge.s32.totalorder %s35, 1
      %s37 = scalar_select %p36, 0, %s35
      %s38 = sadd.s32 1, %s29
      %s39 = scalar_select %p36, %s38, %s29
      %p40 = scmp.ge.s32.totalorder %s39, 2
      %s41 = scalar_select %p40, 0, %s39
      %s43 = sadd.s32 %s42, 1
      %p46 = scmp.eq.s32.totalorder %s22, 1
      %p47 = scmp.ne.s32.totalorder %s42, %s44
      %p48 = scmp.eq.s32.totalorder %s22, 0
      %p49 = por %p47, %p48
      %p50 = scmp.ne.s32.totalorder %s42, %s44
      %p51 = scmp.eq.s32.totalorder %s27, 1
      %p52 = por %p50, %p51
      %p53 = scmp.ne.s32.totalorder %s44, %s45
      %p54 = scmp.eq.s32.totalorder %s27, 0
      %p55 = por %p53, %p54
      %p56 = scmp.ne.s32.totalorder %s44, %s45
      %p57 = scmp.eq.s32.totalorder %s28, 1
      %p58 = por %p56, %p57
      %p60 = scmp.ne.s32.totalorder %s45, %s59
      %p61 = scmp.eq.s32.totalorder %s28, 0
      %p62 = por %p60, %p61
      %s63 = ssub.s32 %s29, %s41
      %s64 = ssub.s32 %s30, %s37
      %s65 = sor.u32 %s63, %s64
      %p66 = scmp.eq.s32.totalorder %s65, 0
      %s68 = sadd.s32 %s67, 1
      %s69 = scalar_select %p66, %s67, %s68
      %p72 = pneg %p66
      %p73 = scmp.eq.s32.totalorder %s22, 1
      %p74 = por %p72, %p73
      %p75 = scmp.ne.s32.totalorder %s67, %s70
      %p76 = scmp.eq.s32.totalorder %s22, 0
      %p77 = por %p75, %p76
      %p78 = scmp.ne.s32.totalorder %s67, %s70
      %p79 = scmp.eq.s32.totalorder %s27, 1
      %p80 = por %p78, %p79
      %p81 = scmp.ne.s32.totalorder %s70, %s71
      %p82 = scmp.eq.s32.totalorder %s27, 0
      %p83 = por %p81, %p82
      %p84 = scmp.ne.s32.totalorder %s70, %s71
      %p85 = scmp.eq.s32.totalorder %s28, 1
      %p86 = por %p84, %p85
      %p88 = scmp.ne.s32.totalorder %s71, %s87
      %p89 = scmp.eq.s32.totalorder %s28, 0
      %p90 = por %p88, %p89
      %s92 = sadd.s32 %s91, 1
      %p95 = scmp.eq.s32.totalorder %s22, 1
      %p96 = scmp.ne.s32.totalorder %s91, %s93
      %p97 = scmp.eq.s32.totalorder %s22, 0
      %p98 = por %p96, %p97
      %p99 = scmp.ne.s32.totalorder %s91, %s93
      %p100 = scmp.eq.s32.totalorder %s27, 1
      %p101 = por %p99, %p100
      %p102 = scmp.ne.s32.totalorder %s93, %s94
      %p103 = scmp.eq.s32.totalorder %s27, 0
      %p104 = por %p102, %p103
      %p105 = scmp.ne.s32.totalorder %s93, %s94
      %p106 = scmp.eq.s32.totalorder %s28, 1
      %p107 = por %p105, %p106
      %p109 = scmp.ne.s32.totalorder %s94, %s108
      %p110 = scmp.eq.s32.totalorder %s28, 0
      %p111 = por %p109, %p110
      %s113 = sadd.s32 %s112, 1
      %p116 = scmp.eq.s32.totalorder %s22, 1
      %p117 = scmp.ne.s32.totalorder %s112, %s114
      %p118 = scmp.eq.s32.totalorder %s22, 0
      %p119 = por %p117, %p118
      %p120 = scmp.ne.s32.totalorder %s112, %s114
      %p121 = scmp.eq.s32.totalorder %s27, 1
      %p122 = por %p120, %p121
      %p123 = scmp.ne.s32.totalorder %s114, %s115
      %p124 = scmp.eq.s32.totalorder %s27, 0
      %p125 = por %p123, %p124
      %p126 = scmp.ne.s32.totalorder %s114, %s115
      %p127 = scmp.eq.s32.totalorder %s28, 1
      %p128 = por %p126, %p127
      %p130 = scmp.ne.s32.totalorder %s115, %s129
      %p131 = scmp.eq.s32.totalorder %s28, 0
      %p132 = por %p130, %p131
      %s134 = sadd.s32 %s133, 1
      %p137 = scmp.eq.s32.totalorder %s22, 1
      %p138 = scmp.ne.s32.totalorder %s133, %s135
      %p139 = scmp.eq.s32.totalorder %s22, 0
      %p140 = por %p138, %p139
      %p141 = scmp.ne.s32.totalorder %s133, %s135
      %p142 = scmp.eq.s32.totalorder %s27, 1
      %p143 = por %p141, %p142
      %p144 = scmp.ne.s32.totalorder %s135, %s136
      %p145 = scmp.eq.s32.totalorder %s27, 0
      %p146 = por %p144, %p145
      %p147 = scmp.ne.s32.totalorder %s135, %s136
      %p148 = scmp.eq.s32.totalorder %s28, 1
      %p149 = por %p147, %p148
      %p151 = scmp.ne.s32.totalorder %s136, %s150
      %p152 = scmp.eq.s32.totalorder %s28, 0
      %p153 = por %p151, %p152
      %s155 = sadd.s32 %s154, 1
      %p158 = scmp.eq.s32.totalorder %s22, 1
      %p159 = scmp.ne.s32.totalorder %s154, %s156
      %p160 = scmp.eq.s32.totalorder %s22, 0
      %p161 = por %p159, %p160
      %p162 = scmp.ne.s32.totalorder %s154, %s156
      %p163 = scmp.eq.s32.totalorder %s27, 1
      %p164 = por %p162, %p163
      %p165 = scmp.ne.s32.totalorder %s156, %s157
      %p166 = scmp.eq.s32.totalorder %s27, 0
      %p167 = por %p165, %p166
      %p168 = scmp.ne.s32.totalorder %s156, %s157
      %p169 = scmp.eq.s32.totalorder %s28, 1
      %p170 = por %p168, %p169
      %p172 = scmp.ne.s32.totalorder %s157, %s171
      %p173 = scmp.eq.s32.totalorder %s28, 0
      %p174 = por %p172, %p173
      %s176 = sadd.s32 %s175, 1
      %p179 = scmp.eq.s32.totalorder %s22, 1
      %p180 = scmp.ne.s32.totalorder %s175, %s177
      %p181 = scmp.eq.s32.totalorder %s22, 0
      %p182 = por %p180, %p181
      %p183 = scmp.ne.s32.totalorder %s175, %s177
      %p184 = scmp.eq.s32.totalorder %s27, 1
      %p185 = por %p183, %p184
      %p186 = scmp.ne.s32.totalorder %s177, %s178
      %p187 = scmp.eq.s32.totalorder %s27, 0
      %p188 = por %p186, %p187
      %p189 = scmp.ne.s32.totalorder %s177, %s178
      %p190 = scmp.eq.s32.totalorder %s28, 1
      %p191 = por %p189, %p190
      %p193 = scmp.ne.s32.totalorder %s178, %s192
      %p194 = scmp.eq.s32.totalorder %s28, 0
      %p195 = por %p193, %p194
      %s196 = ssub.s32 %s29, %s41
      %p197 = scmp.eq.s32.totalorder %s196, 0
      %s199 = sadd.s32 %s198, 1
      %s200 = scalar_select %p197, %s198, %s199
      %p203 = pneg %p197
      %p204 = scmp.eq.s32.totalorder %s22, 1
      %p205 = por %p203, %p204
      %p206 = scmp.ne.s32.totalorder %s198, %s201
      %p207 = scmp.eq.s32.totalorder %s22, 0
      %p208 = por %p206, %p207
      %p209 = scmp.ne.s32.totalorder %s198, %s201
      %p210 = scmp.eq.s32.totalorder %s27, 1
      %p211 = por %p209, %p210
      %p212 = scmp.ne.s32.totalorder %s201, %s202
      %p213 = scmp.eq.s32.totalorder %s27, 0
      %p214 = por %p212, %p213
      %p215 = scmp.ne.s32.totalorder %s201, %s202
      %p216 = scmp.eq.s32.totalorder %s28, 1
      %p217 = por %p215, %p216
      %p219 = scmp.ne.s32.totalorder %s202, %s218
      %p220 = scmp.eq.s32.totalorder %s28, 0
      %p221 = por %p219, %p220
      %p222 = scmp.le.s32.totalorder 1, %s22
      %p223 = scmp.lt.s32.totalorder %s22, 3
      %p224 = pnand %p222, %p223
      %p225 = pneg %p224
      // Predicated region
      $region9: #{tpu_custom_call.1} parent=5 // pred_check
        _
      $region10: #{tpu_custom_call.1} parent=5 // pred_check_branch
        %227 = sbr.rel (%p224) target = $region12
      $region11: #{tpu_custom_call.1} parent=5 // pred_region
        %s228 = ssub.s32 %s22, 1
        // Predicated region
        $region13: #{tpu_custom_call.1} parent=11 // pred_check
          %p229 = pneg %p55
        $region14: #{tpu_custom_call.1} parent=11 // pred_check_branch
          %231 = sbr.rel (%p229) target = $region16
        $region15: #{tpu_custom_call.1} parent=11 // pred_region
          _
        $region16: #{tpu_custom_call.1} parent=11 // pred_fallthru
          _
        // Predicated region
        $region17: #{tpu_custom_call.1} parent=11 // pred_check
          %p232 = pneg %p104
        $region18: #{tpu_custom_call.1} parent=11 // pred_check_branch
          %234 = sbr.rel (%p232) target = $region20
        $region19: #{tpu_custom_call.1} parent=11 // pred_region
          %s236 = ssub.s32 3072, 3072
          %237 = vsyncadd [#allocation8], %s236
          %s238 = sshll.u32 [#allocation7], 4
          %s239 = int_to_ptr.vmem [resolvable:$true] %s238
          %244 = dma.hbm_to_vmem [thread:$0]  %s2, 3072, %s239, [#allocation8], 64, 64, 4
        $region20: #{tpu_custom_call.1} parent=11 // pred_fallthru
          _
        // Predicated region
        $region21: #{tpu_custom_call.1} parent=11 // pred_check
          %p245 = pneg %p125
        $region22: #{tpu_custom_call.1} parent=11 // pred_check_branch
          %247 = sbr.rel (%p245) target = $region24
        $region23: #{tpu_custom_call.1} parent=11 // pred_region
          %s249 = ssub.s32 1024, 1024
          %250 = vsyncadd [#allocation8], %s249
          %s251 = sshll.u32 [#allocation9], 4
          %s252 = int_to_ptr.vmem [resolvable:$true] %s251
          %257 = dma.hbm_to_vmem [thread:$0]  %s3, 1024, %s252, [#allocation8], 128, 128, 8
        $region24: #{tpu_custom_call.1} parent=11 // pred_fallthru
          _
        // Predicated region
        $region25: #{tpu_custom_call.1} parent=11 // pred_check
          %p258 = pneg %p146
        $region26: #{tpu_custom_call.1} parent=11 // pred_check_branch
          %260 = sbr.rel (%p258) target = $region28
        $region27: #{tpu_custom_call.1} parent=11 // pred_region
          _
        $region28: #{tpu_custom_call.1} parent=11 // pred_fallthru
          _
        // Predicated region
        $region29: #{tpu_custom_call.1} parent=11 // pred_check
          %p261 = pneg %p167
        $region30: #{tpu_custom_call.1} parent=11 // pred_check_branch
          %263 = sbr.rel (%p261) target = $region32
        $region31: #{tpu_custom_call.1} parent=11 // pred_region
          %s265 = ssub.s32 2048, 2048
          %266 = vsyncadd [#allocation11], %s265
          %s267 = sshll.u32 [#allocation10], 4
          %s268 = int_to_ptr.vmem [resolvable:$true] %s267
          %273 = dma.hbm_to_vmem [thread:$0]  %s5, 2048, %s268, [#allocation11], 128, 128, 8
        $region32: #{tpu_custom_call.1} parent=11 // pred_fallthru
          _
        // Predicated region
        $region33: #{tpu_custom_call.1} parent=11 // pred_check
          %p274 = pneg %p188
        $region34: #{tpu_custom_call.1} parent=11 // pred_check_branch
          %276 = sbr.rel (%p274) target = $region36
        $region35: #{tpu_custom_call.1} parent=11 // pred_region
          _
        $region36: #{tpu_custom_call.1} parent=11 // pred_fallthru
          _
      $region12: #{tpu_custom_call.1} parent=5 // pred_fallthru
        _
      %p277 = scmp.lt.s32.totalorder %s22, 2
      // Predicated region
      $region37: #{tpu_custom_call.1} parent=5 // pred_check
        %p278 = pneg %p277
      $region38: #{tpu_custom_call.1} parent=5 // pred_check_branch
        %280 = sbr.rel (%p278) target = $region40
      $region39: #{tpu_custom_call.1} parent=5 // pred_region
        // Predicated region
        $region41: #{tpu_custom_call.1} parent=39 // pred_check
          %p281 = pneg %p77
        $region42: #{tpu_custom_call.1} parent=39 // pred_check_branch
          %283 = sbr.rel (%p281) target = $region44
        $region43: #{tpu_custom_call.1} parent=39 // pred_region
          %s284 = sand.u32 %s67, 1
          %s285 = scalar_lea.sflag [#allocation5], %s284
          %s286 = sand.u32 %s67, 1
          %s287 = smul.addr %s286, 288
          %s288 = scalar_lea.vmem [#allocation4], %s287
          %s289 = smul.u32 24, %s29
          %s290 = smul.u32 3, %s30
          %s292 = ssub.s32 4608, 4608
          %293 = vsyncadd %s285, %s292
          %s294 = smul.addr %s289, 3
          %s295 = sadd.s32 %s290, %s294
          %s296 = smul.addr %s295, 64
          %s297 = scalar_lea.hbm %s1, %s296
          %s298 = sshll.u32 %s288, 4
          %s299 = int_to_ptr.vmem [resolvable:$true] %s298
          %304 = dma.hbm_to_vmem [thread:$0]  %s297, 4608, %s299, %s285, 192, 192, 12
        $region44: #{tpu_custom_call.1} parent=39 // pred_fallthru
          _
      $region40: #{tpu_custom_call.1} parent=5 // pred_fallthru
        _
      %p305 = scmp.le.s32.totalorder 1, %s22
      %p306 = scmp.lt.s32.totalorder %s22, 3
      %p307 = pnand %p305, %p306
      %p308 = pneg %p307
      // Predicated region
      $region45: #{tpu_custom_call.1} parent=5 // pred_check
        _
      $region46: #{tpu_custom_call.1} parent=5 // pred_check_branch
        %310 = sbr.rel (%p307) target = $region48
      $region47: #{tpu_custom_call.1} parent=5 // pred_region
        %s311 = ssub.s32 %s22, 1
        %s312 = sand.u32 %s70, 1
        %s313 = scalar_lea.sflag [#allocation5], %s312
        %s314 = sand.u32 %s70, 1
        %s315 = smul.addr %s314, 288
        %s316 = scalar_lea.vmem [#allocation4], %s315
        // Predicated region
        $region49: #{tpu_custom_call.1} parent=47 // pred_check
          %p317 = pneg %p83
        $region50: #{tpu_custom_call.1} parent=47 // pred_check_branch
          %319 = sbr.rel (%p317) target = $region52
        $region51: #{tpu_custom_call.1} parent=47 // pred_region
          %320 = dma.done %s313, 4608
        $region52: #{tpu_custom_call.1} parent=47 // pred_fallthru
          _
        // Predicated region
        $region53: #{tpu_custom_call.1} parent=47 // pred_check
          %p321 = pneg %p104
        $region54: #{tpu_custom_call.1} parent=47 // pred_check_branch
          %323 = sbr.rel (%p321) target = $region56
        $region55: #{tpu_custom_call.1} parent=47 // pred_region
          %324 = dma.done [#allocation8], 3072
        $region56: #{tpu_custom_call.1} parent=47 // pred_fallthru
          _
        // Predicated region
        $region57: #{tpu_custom_call.1} parent=47 // pred_check
          %p325 = pneg %p125
        $region58: #{tpu_custom_call.1} parent=47 // pred_check_branch
          %327 = sbr.rel (%p325) target = $region60
        $region59: #{tpu_custom_call.1} parent=47 // pred_region
          %328 = dma.done [#allocation8], 1024
        $region60: #{tpu_custom_call.1} parent=47 // pred_fallthru
          _
        // Predicated region
        $region61: #{tpu_custom_call.1} parent=47 // pred_check
          %p329 = pneg %p167
        $region62: #{tpu_custom_call.1} parent=47 // pred_check_branch
          %331 = sbr.rel (%p329) target = $region64
        $region63: #{tpu_custom_call.1} parent=47 // pred_region
          %332 = dma.done [#allocation11], 2048
        $region64: #{tpu_custom_call.1} parent=47 // pred_fallthru
          _
        %p333 = pneg %p55
        %p334 = pneg %p52
        %s335 = sand.u32 %s70, 1
        %s336 = scalar_lea.sflag [#allocation5], %s335
        %s337 = sand.u32 %s70, 1
        %s338 = smul.addr %s337, 288
        %s339 = scalar_lea.vmem [#allocation4], %s338
        %p340 = pneg %p83
        %p341 = pneg %p80
        %p342 = pneg %p104
        %p343 = pneg %p101
        %p344 = pneg %p125
        %p345 = pneg %p122
        %p346 = pneg %p146
        %p347 = pneg %p143
        %p348 = pneg %p167
        %p349 = pneg %p164
        %p350 = pneg %p188
        %p351 = pneg %p185
        %p352 = pneg %p214
        %p353 = pneg %p211
        %s354 = sand.u32 %s201, 1
        %s355 = scalar_lea.sflag [#allocation6], %s354
        %s356 = sand.u32 %s201, 1
        %s357 = smul.addr %s356, 192
        %s358 = scalar_lea.vmem [#allocation12], %s357
        %s359 = smul.u32 24, %s31
        %s360 = smul.u32 3, %s32
        %s361 = smul.u32 24, %s31
        %p363 = scmp.eq.s32.totalorder %s32, 0
        // Predicated region
        $region65: #{tpu_custom_call.1} parent=47 // pred_check
          %p364 = pneg %p363
        $region66: #{tpu_custom_call.1} parent=47 // pred_check_branch
          %366 = sbr.rel (%p364) target = $region68
        $region67: #{tpu_custom_call.1} parent=47 // pred_region
          %367 = vst [vmem:[#allocation2] sm:$0xff] 0.0
          %368 = vst [vmem:[#allocation2 + $0x8] sm:$0xff] 0.0
          %369 = vst [vmem:[#allocation2 + $0x10] sm:$0xff] 0.0
          %370 = vst [vmem:[#allocation2 + $0x18] sm:$0xff] 0.0
          %371 = vst [vmem:[#allocation2 + $0x20] sm:$0xff] 0.0
          %372 = vst [vmem:[#allocation2 + $0x28] sm:$0xff] 0.0
          %373 = vst [vmem:[#allocation2 + $0x30] sm:$0xff] 0.0
          %374 = vst [vmem:[#allocation2 + $0x38] sm:$0xff] 0.0
          %375 = vst [vmem:[#allocation2 + $0x40] sm:$0xff] 0.0
          %376 = vst [vmem:[#allocation2 + $0x48] sm:$0xff] 0.0
          %377 = vst [vmem:[#allocation2 + $0x50] sm:$0xff] 0.0
          %378 = vst [vmem:[#allocation2 + $0x58] sm:$0xff] 0.0
          %379 = vst [vmem:[#allocation2 + $0x60] sm:$0xff] 0.0
          %380 = vst [vmem:[#allocation2 + $0x68] sm:$0xff] 0.0
          %381 = vst [vmem:[#allocation2 + $0x70] sm:$0xff] 0.0
          %382 = vst [vmem:[#allocation2 + $0x78] sm:$0xff] 0.0
          %383 = vst [vmem:[#allocation2 + $0x80] sm:$0xff] 0.0
          %384 = vst [vmem:[#allocation2 + $0x88] sm:$0xff] 0.0
          %385 = vst [vmem:[#allocation2 + $0x90] sm:$0xff] 0.0
          %386 = vst [vmem:[#allocation2 + $0x98] sm:$0xff] 0.0
          %387 = vst [vmem:[#allocation2 + $0xa0] sm:$0xff] 0.0
          %388 = vst [vmem:[#allocation2 + $0xa8] sm:$0xff] 0.0
          %389 = vst [vmem:[#allocation2 + $0xb0] sm:$0xff] 0.0
          %390 = vst [vmem:[#allocation2 + $0xb8] sm:$0xff] 0.0
        $region68: #{tpu_custom_call.1} parent=47 // pred_fallthru
          _
        %s391 = smul.u32 %s32, 384
        %s392 = sshra.s32 %s391, 3
        %s393 = sand.u32 %s391, 7
        %s394 = smul.addr %s392, 4
        %s395 = scalar_lea.vmem [#allocation7], %s394
        %v396 = vld [vmem:[%s395] sm:$0xf]
        %v397 = vld [vmem:[%s395 + $0x4] sm:$0xf]
        %v398 = vld [vmem:[%s395 + $0x8] sm:$0xf]
        %v399 = vld [vmem:[%s395 + $0xc] sm:$0xf]
        %v400 = vld [vmem:[%s395 + $0x10] sm:$0xf]
        %v401 = vld [vmem:[%s395 + $0x14] sm:$0xf]
        %v402 = vld [vmem:[%s395 + $0x18] sm:$0xf]
        %v403 = vld [vmem:[%s395 + $0x1c] sm:$0xf]
        %v404 = vld [vmem:[%s395 + $0x20] sm:$0xf]
        %v405 = vld [vmem:[%s395 + $0x24] sm:$0xf]
        %v406 = vld [vmem:[%s395 + $0x28] sm:$0xf]
        %v407 = vld [vmem:[%s395 + $0x2c] sm:$0xf]
        %v408 = vld [vmem:[%s395 + $0x30] sm:$0xf]
        %v409 = vld [vmem:[%s395 + $0x34] sm:$0xf]
        %v410 = vld [vmem:[%s395 + $0x38] sm:$0xf]
        %v411 = vld [vmem:[%s395 + $0x3c] sm:$0xf]
        %v412 = vld [vmem:[%s395 + $0x40] sm:$0xf]
        %v413 = vld [vmem:[%s395 + $0x44] sm:$0xf]
        %v414 = vld [vmem:[%s395 + $0x48] sm:$0xf]
        %v415 = vld [vmem:[%s395 + $0x4c] sm:$0xf]
        %v416 = vld [vmem:[%s395 + $0x50] sm:$0xf]
        %v417 = vld [vmem:[%s395 + $0x54] sm:$0xf]
        %v418 = vld [vmem:[%s395 + $0x58] sm:$0xf]
        %v419 = vld [vmem:[%s395 + $0x5c] sm:$0xf]
        %v420 = vld [vmem:[%s395 + $0x60] sm:$0xf]
        %v421 = vld [vmem:[%s395 + $0x64] sm:$0xf]
        %v422 = vld [vmem:[%s395 + $0x68] sm:$0xf]
        %v423 = vld [vmem:[%s395 + $0x6c] sm:$0xf]
        %v424 = vld [vmem:[%s395 + $0x70] sm:$0xf]
        %v425 = vld [vmem:[%s395 + $0x74] sm:$0xf]
        %v426 = vld [vmem:[%s395 + $0x78] sm:$0xf]
        %v427 = vld [vmem:[%s395 + $0x7c] sm:$0xf]
        %v428 = vld [vmem:[%s395 + $0x80] sm:$0xf]
        %v429 = vld [vmem:[%s395 + $0x84] sm:$0xf]
        %v430 = vld [vmem:[%s395 + $0x88] sm:$0xf]
        %v431 = vld [vmem:[%s395 + $0x8c] sm:$0xf]
        %v432 = vld [vmem:[%s395 + $0x90] sm:$0xf]
        %v433 = vld [vmem:[%s395 + $0x94] sm:$0xf]
        %v434 = vld [vmem:[%s395 + $0x98] sm:$0xf]
        %v435 = vld [vmem:[%s395 + $0x9c] sm:$0xf]
        %v436 = vld [vmem:[%s395 + $0xa0] sm:$0xf]
        %v437 = vld [vmem:[%s395 + $0xa4] sm:$0xf]
        %v438 = vld [vmem:[%s395 + $0xa8] sm:$0xf]
        %v439 = vld [vmem:[%s395 + $0xac] sm:$0xf]
        %v440 = vld [vmem:[%s395 + $0xb0] sm:$0xf]
        %v441 = vld [vmem:[%s395 + $0xb4] sm:$0xf]
        %v442 = vld [vmem:[%s395 + $0xb8] sm:$0xf]
        %v443 = vld [vmem:[%s395 + $0xbc] sm:$0xf]
        %v444 = vld [vmem:[#allocation2] sm:$0xff]
        %v445 = vld [vmem:[#allocation2 + $0x8] sm:$0xff]
        %v446 = vld [vmem:[#allocation2 + $0x10] sm:$0xff]
        %v447 = vld [vmem:[#allocation2 + $0x18] sm:$0xff]
        %v448 = vld [vmem:[#allocation2 + $0x20] sm:$0xff]
        %v449 = vld [vmem:[#allocation2 + $0x28] sm:$0xff]
        %v450 = vld [vmem:[#allocation2 + $0x30] sm:$0xff]
        %v451 = vld [vmem:[#allocation2 + $0x38] sm:$0xff]
        %v452 = vld [vmem:[#allocation2 + $0x40] sm:$0xff]
        %v453 = vld [vmem:[#allocation2 + $0x48] sm:$0xff]
        %v454 = vld [vmem:[#allocation2 + $0x50] sm:$0xff]
        %v455 = vld [vmem:[#allocation2 + $0x58] sm:$0xff]
        %v456 = vld [vmem:[#allocation2 + $0x60] sm:$0xff]
        %v457 = vld [vmem:[#allocation2 + $0x68] sm:$0xff]
        %v458 = vld [vmem:[#allocation2 + $0x70] sm:$0xff]
        %v459 = vld [vmem:[#allocation2 + $0x78] sm:$0xff]
        %v460 = vld [vmem:[#allocation2 + $0x80] sm:$0xff]
        %v461 = vld [vmem:[#allocation2 + $0x88] sm:$0xff]
        %v462 = vld [vmem:[#allocation2 + $0x90] sm:$0xff]
        %v463 = vld [vmem:[#allocation2 + $0x98] sm:$0xff]
        %v464 = vld [vmem:[#allocation2 + $0xa0] sm:$0xff]
        %v465 = vld [vmem:[#allocation2 + $0xa8] sm:$0xff]
        %v466 = vld [vmem:[#allocation2 + $0xb0] sm:$0xff]
        %v467 = vld [vmem:[#allocation2 + $0xb8] sm:$0xff]
        %v468 = vld [vmem:[%s316] sm:$0xff]
        %v469 = vld [vmem:[%s316 + $0x8] sm:$0xf]
        %v470 = vld [vmem:[%s316 + $0xc] sm:$0xff]
        %v471 = vld [vmem:[%s316 + $0x14] sm:$0xf]
        %v472 = vld [vmem:[%s316 + $0x18] sm:$0xff]
        %v473 = vld [vmem:[%s316 + $0x20] sm:$0xf]
        %v474 = vld [vmem:[%s316 + $0x24] sm:$0xff]
        %v475 = vld [vmem:[%s316 + $0x2c] sm:$0xf]
        %v476 = vld [vmem:[%s316 + $0x30] sm:$0xff]
        %v477 = vld [vmem:[%s316 + $0x38] sm:$0xf]
        %v478 = vld [vmem:[%s316 + $0x3c] sm:$0xff]
        %v479 = vld [vmem:[%s316 + $0x44] sm:$0xf]
        %v480 = vld [vmem:[%s316 + $0x48] sm:$0xff]
        %v481 = vld [vmem:[%s316 + $0x50] sm:$0xf]
        %v482 = vld [vmem:[%s316 + $0x54] sm:$0xff]
        %v483 = vld [vmem:[%s316 + $0x5c] sm:$0xf]
        %v484 = vld [vmem:[%s316 + $0x60] sm:$0xff]
        %v485 = vld [vmem:[%s316 + $0x68] sm:$0xf]
        %v486 = vld [vmem:[%s316 + $0x6c] sm:$0xff]
        %v487 = vld [vmem:[%s316 + $0x74] sm:$0xf]
        %v488 = vld [vmem:[%s316 + $0x78] sm:$0xff]
        %v489 = vld [vmem:[%s316 + $0x80] sm:$0xf]
        %v490 = vld [vmem:[%s316 + $0x84] sm:$0xff]
        %v491 = vld [vmem:[%s316 + $0x8c] sm:$0xf]
        %v492 = vld [vmem:[%s316 + $0x90] sm:$0xff]
        %v493 = vld [vmem:[%s316 + $0x98] sm:$0xf]
        %v494 = vld [vmem:[%s316 + $0x9c] sm:$0xff]
        %v495 = vld [vmem:[%s316 + $0xa4] sm:$0xf]
        %v496 = vld [vmem:[%s316 + $0xa8] sm:$0xff]
        %v497 = vld [vmem:[%s316 + $0xb0] sm:$0xf]
        %v498 = vld [vmem:[%s316 + $0xb4] sm:$0xff]
        %v499 = vld [vmem:[%s316 + $0xbc] sm:$0xf]
        %v500 = vld [vmem:[%s316 + $0xc0] sm:$0xff]
        %v501 = vld [vmem:[%s316 + $0xc8] sm:$0xf]
        %v502 = vld [vmem:[%s316 + $0xcc] sm:$0xff]
        %v503 = vld [vmem:[%s316 + $0xd4] sm:$0xf]
        %v504 = vld [vmem:[%s316 + $0xd8] sm:$0xff]
        %v505 = vld [vmem:[%s316 + $0xe0] sm:$0xf]
        %v506 = vld [vmem:[%s316 + $0xe4] sm:$0xff]
        %v507 = vld [vmem:[%s316 + $0xec] sm:$0xf]
        %v508 = vld [vmem:[%s316 + $0xf0] sm:$0xff]
        %v509 = vld [vmem:[%s316 + $0xf8] sm:$0xf]
        %v510 = vld [vmem:[%s316 + $0xfc] sm:$0xff]
        %v511 = vld [vmem:[%s316 + $0x104] sm:$0xf]
        %v512 = vld [vmem:[%s316 + $0x108] sm:$0xff]
        %v513 = vld [vmem:[%s316 + $0x110] sm:$0xf]
        %v514 = vld [vmem:[%s316 + $0x114] sm:$0xff]
        %v515 = vld [vmem:[%s316 + $0x11c] sm:$0xf]
        %v564 = vunpack.c.l.b16 %v468
        %v565 = vunpack.c.h.b16 %v468
        %v566 = vunpack.c.l.b16 %v469
        %v567 = vunpack.c.l.b16 %v470
        %v568 = vunpack.c.h.b16 %v470
        %v569 = vunpack.c.l.b16 %v471
        %v570 = vunpack.c.l.b16 %v472
        %v571 = vunpack.c.h.b16 %v472
        %v572 = vunpack.c.l.b16 %v473
        %v573 = vunpack.c.l.b16 %v474
        %v574 = vunpack.c.h.b16 %v474
        %v575 = vunpack.c.l.b16 %v475
        %v576 = vunpack.c.l.b16 %v476
        %v577 = vunpack.c.h.b16 %v476
        %v578 = vunpack.c.l.b16 %v477
        %v579 = vunpack.c.l.b16 %v478
        %v580 = vunpack.c.h.b16 %v478
        %v581 = vunpack.c.l.b16 %v479
        %v582 = vunpack.c.l.b16 %v480
        %v583 = vunpack.c.h.b16 %v480
        %v584 = vunpack.c.l.b16 %v481
        %v585 = vunpack.c.l.b16 %v482
        %v586 = vunpack.c.h.b16 %v482
        %v587 = vunpack.c.l.b16 %v483
        %v588 = vunpack.c.l.b16 %v484
        %v589 = vunpack.c.h.b16 %v484
        %v590 = vunpack.c.l.b16 %v485
        %v591 = vunpack.c.l.b16 %v486
        %v592 = vunpack.c.h.b16 %v486
        %v593 = vunpack.c.l.b16 %v487
        %v594 = vunpack.c.l.b16 %v488
        %v595 = vunpack.c.h.b16 %v488
        %v596 = vunpack.c.l.b16 %v489
        %v597 = vunpack.c.l.b16 %v490
        %v598 = vunpack.c.h.b16 %v490
        %v599 = vunpack.c.l.b16 %v491
        %v600 = vunpack.c.l.b16 %v492
        %v601 = vunpack.c.h.b16 %v492
        %v602 = vunpack.c.l.b16 %v493
        %v603 = vunpack.c.l.b16 %v494
        %v604 = vunpack.c.h.b16 %v494
        %v605 = vunpack.c.l.b16 %v495
        %v606 = vunpack.c.l.b16 %v496
        %v607 = vunpack.c.h.b16 %v496
        %v608 = vunpack.c.l.b16 %v497
        %v609 = vunpack.c.l.b16 %v498
        %v610 = vunpack.c.h.b16 %v498
        %v611 = vunpack.c.l.b16 %v499
        %v612 = vunpack.c.l.b16 %v500
        %v613 = vunpack.c.h.b16 %v500
        %v614 = vunpack.c.l.b16 %v501
        %v615 = vunpack.c.l.b16 %v502
        %v616 = vunpack.c.h.b16 %v502
        %v617 = vunpack.c.l.b16 %v503
        %v618 = vunpack.c.l.b16 %v504
        %v619 = vunpack.c.h.b16 %v504
        %v620 = vunpack.c.l.b16 %v505
        %v621 = vunpack.c.l.b16 %v506
        %v622 = vunpack.c.h.b16 %v506
        %v623 = vunpack.c.l.b16 %v507
        %v624 = vunpack.c.l.b16 %v508
        %v625 = vunpack.c.h.b16 %v508
        %v626 = vunpack.c.l.b16 %v509
        %v627 = vunpack.c.l.b16 %v510
        %v628 = vunpack.c.h.b16 %v510
        %v629 = vunpack.c.l.b16 %v511
        %v630 = vunpack.c.l.b16 %v512
        %v631 = vunpack.c.h.b16 %v512
        %v632 = vunpack.c.l.b16 %v513
        %v633 = vunpack.c.l.b16 %v514
        %v634 = vunpack.c.h.b16 %v514
        %v635 = vunpack.c.l.b16 %v515
        %v636 = vpack.c.b16 %v567, %v564
        %v637 = vpack.c.b16 %v568, %v565
        %v638 = vpack.c.b16 %v569, %v566
        %v639 = vpack.c.b16 %v573, %v570
        %v640 = vpack.c.b16 %v574, %v571
        %v641 = vpack.c.b16 %v575, %v572
        %v642 = vpack.c.b16 %v579, %v576
        %v643 = vpack.c.b16 %v580, %v577
        %v644 = vpack.c.b16 %v581, %v578
        %v645 = vpack.c.b16 %v585, %v582
        %v646 = vpack.c.b16 %v586, %v583
        %v647 = vpack.c.b16 %v587, %v584
        %v648 = vpack.c.b16 %v591, %v588
        %v649 = vpack.c.b16 %v592, %v589
        %v650 = vpack.c.b16 %v593, %v590
        %v651 = vpack.c.b16 %v597, %v594
        %v652 = vpack.c.b16 %v598, %v595
        %v653 = vpack.c.b16 %v599, %v596
        %v654 = vpack.c.b16 %v603, %v600
        %v655 = vpack.c.b16 %v604, %v601
        %v656 = vpack.c.b16 %v605, %v602
        %v657 = vpack.c.b16 %v609, %v606
        %v658 = vpack.c.b16 %v610, %v607
        %v659 = vpack.c.b16 %v611, %v608
        %v660 = vpack.c.b16 %v615, %v612
        %v661 = vpack.c.b16 %v616, %v613
        %v662 = vpack.c.b16 %v617, %v614
        %v663 = vpack.c.b16 %v621, %v618
        %v664 = vpack.c.b16 %v622, %v619
        %v665 = vpack.c.b16 %v623, %v620
        %v666 = vpack.c.b16 %v627, %v624
        %v667 = vpack.c.b16 %v628, %v625
        %v668 = vpack.c.b16 %v629, %v626
        %v669 = vpack.c.b16 %v633, %v630
        %v670 = vpack.c.b16 %v634, %v631
        %v671 = vpack.c.b16 %v635, %v632
        %v756 = vunpack.c.l.b16 %v396
        %v757 = vunpack.c.l.b16 %v397
        %v758 = vunpack.c.l.b16 %v398
        %v759 = vunpack.c.l.b16 %v399
        %v760 = vunpack.c.l.b16 %v400
        %v761 = vunpack.c.l.b16 %v401
        %v762 = vunpack.c.l.b16 %v402
        %v763 = vunpack.c.l.b16 %v403
        %v764 = vunpack.c.l.b16 %v404
        %v765 = vunpack.c.l.b16 %v405
        %v766 = vunpack.c.l.b16 %v406
        %v767 = vunpack.c.l.b16 %v407
        %v768 = vunpack.c.l.b16 %v408
        %v769 = vunpack.c.l.b16 %v409
        %v770 = vunpack.c.l.b16 %v410
        %v771 = vunpack.c.l.b16 %v411
        %v772 = vunpack.c.l.b16 %v412
        %v773 = vunpack.c.l.b16 %v413
        %v774 = vunpack.c.l.b16 %v414
        %v775 = vunpack.c.l.b16 %v415
        %v776 = vunpack.c.l.b16 %v416
        %v777 = vunpack.c.l.b16 %v417
        %v778 = vunpack.c.l.b16 %v418
        %v779 = vunpack.c.l.b16 %v419
        %v780 = vunpack.c.l.b16 %v420
        %v781 = vunpack.c.l.b16 %v421
        %v782 = vunpack.c.l.b16 %v422
        %v783 = vunpack.c.l.b16 %v423
        %v784 = vunpack.c.l.b16 %v424
        %v785 = vunpack.c.l.b16 %v425
        %v786 = vunpack.c.l.b16 %v426
        %v787 = vunpack.c.l.b16 %v427
        %v788 = vunpack.c.l.b16 %v428
        %v789 = vunpack.c.l.b16 %v429
        %v790 = vunpack.c.l.b16 %v430
        %v791 = vunpack.c.l.b16 %v431
        %v792 = vunpack.c.l.b16 %v432
        %v793 = vunpack.c.l.b16 %v433
        %v794 = vunpack.c.l.b16 %v434
        %v795 = vunpack.c.l.b16 %v435
        %v796 = vunpack.c.l.b16 %v436
        %v797 = vunpack.c.l.b16 %v437
        %v798 = vunpack.c.l.b16 %v438
        %v799 = vunpack.c.l.b16 %v439
        %v800 = vunpack.c.l.b16 %v440
        %v801 = vunpack.c.l.b16 %v441
        %v802 = vunpack.c.l.b16 %v442
        %v803 = vunpack.c.l.b16 %v443
        %v804 = vpack.c.b16 %v757, %v756
        %v805 = vpack.c.b16 %v759, %v758
        %v806 = vpack.c.b16 %v761, %v760
        %v807 = vpack.c.b16 %v763, %v762
        %v808 = vpack.c.b16 %v765, %v764
        %v809 = vpack.c.b16 %v767, %v766
        %v810 = vpack.c.b16 %v769, %v768
        %v811 = vpack.c.b16 %v771, %v770
        %v812 = vpack.c.b16 %v773, %v772
        %v813 = vpack.c.b16 %v775, %v774
        %v814 = vpack.c.b16 %v777, %v776
        %v815 = vpack.c.b16 %v779, %v778
        %v816 = vpack.c.b16 %v781, %v780
        %v817 = vpack.c.b16 %v783, %v782
        %v818 = vpack.c.b16 %v785, %v784
        %v819 = vpack.c.b16 %v787, %v786
        %v820 = vpack.c.b16 %v789, %v788
        %v821 = vpack.c.b16 %v791, %v790
        %v822 = vpack.c.b16 %v793, %v792
        %v823 = vpack.c.b16 %v795, %v794
        %v824 = vpack.c.b16 %v797, %v796
        %v825 = vpack.c.b16 %v799, %v798
        %v826 = vpack.c.b16 %v801, %v800
        %v827 = vpack.c.b16 %v803, %v802
        %852 = vmatprep.subr.bf16.mxu0 0
        %853 = vmatpush1.bf16.msra.mxu0 %v804
        %854 = vmatprep.subr.bf16.mxu0 0
        %855 = vmatpush1.bf16.msra.mxu0 %v805
        %856 = vmatprep.subr.bf16.mxu0 0
        %857 = vmatpush1.bf16.msra.mxu0 %v806
        %858 = vmatprep.subr.bf16.mxu0 0
        %859 = vmatpush1.bf16.msra.mxu0 %v807
        %860 = vmatprep.subr.bf16.mxu0 0
        %861 = vmatpush1.bf16.msra.mxu0 %v808
        %862 = vmatprep.subr.bf16.mxu0 0
        %863 = vmatpush1.bf16.msra.mxu0 %v809
        %864 = vmatprep.subr.bf16.mxu0 0
        %865 = vmatpush1.bf16.msra.mxu0 %v810
        %866 = vmatprep.subr.bf16.mxu0 0
        %867 = vmatpush1.bf16.msra.mxu0 %v811
        %868 = vmatprep.subr.bf16.mxu0 0
        %869 = vmatpush1.bf16.msra.mxu0 %v812
        %870 = vmatprep.subr.bf16.mxu0 0
        %871 = vmatpush1.bf16.msra.mxu0 %v813
        %872 = vmatprep.subr.bf16.mxu0 0
        %873 = vmatpush1.bf16.msra.mxu0 %v814
        %874 = vmatprep.subr.bf16.mxu0 0
        %875 = vmatpush1.bf16.msra.mxu0 %v815
        %876 = vmatprep.subr.bf16.mxu0 0
        %877 = vmatpush1.bf16.msra.mxu0 %v816
        %878 = vmatprep.subr.bf16.mxu0 0
        %879 = vmatpush1.bf16.msra.mxu0 %v817
        %880 = vmatprep.subr.bf16.mxu0 0
        %881 = vmatpush1.bf16.msra.mxu0 %v818
        %882 = vmatprep.subr.bf16.mxu0 0
        %883 = vmatpush1.bf16.msra.mxu0 %v819
        %884 = vmatprep.mubr.bf16.mxu0 %v637
        %885 = vmatmul.mubr.bf16.gmra.mrb[0].mxu0 %v636
        %v886 = vpop.f32.mrb[0].mxu0
        %v887 = vadd.f32 0.0, %v886
        %v888 = vpop.f32.mrb[0].mxu0
        %v889 = vpop.f32.mrb[0].mxu0
        %v890 = vadd.f32 0.0, %v889
        %v891 = vpop.f32.mrb[0].mxu0
        %892 = vmatprep.mubr.bf16.mxu0 %v640
        %893 = vmatmul.mubr.bf16.gmra.mrb[0].mxu0 %v639
        %v894 = vpop.f32.mrb[0].mxu0
        %v895 = vadd.f32 0.0, %v894
        %v896 = vpop.f32.mrb[0].mxu0
        %v897 = vpop.f32.mrb[0].mxu0
        %v898 = vadd.f32 0.0, %v897
        %v899 = vpop.f32.mrb[0].mxu0
        %900 = vmatprep.mubr.bf16.mxu0 %v643
        %901 = vmatmul.mubr.bf16.gmra.mrb[0].mxu0 %v642
        %v902 = vpop.f32.mrb[0].mxu0
        %v903 = vadd.f32 0.0, %v902
        %v904 = vpop.f32.mrb[0].mxu0
        %v905 = vpop.f32.mrb[0].mxu0
        %v906 = vadd.f32 0.0, %v905
        %v907 = vpop.f32.mrb[0].mxu0
        %908 = vmatprep.mubr.bf16.mxu0 %v646
        %909 = vmatmul.mubr.bf16.gmra.mrb[0].mxu0 %v645
        %v910 = vpop.f32.mrb[0].mxu0
        %v911 = vadd.f32 0.0, %v910
        %v912 = vpop.f32.mrb[0].mxu0
        %v913 = vpop.f32.mrb[0].mxu0
        %v914 = vadd.f32 0.0, %v913
        %v915 = vpop.f32.mrb[0].mxu0
        %916 = vmatprep.mubr.bf16.mxu0 %v649
        %917 = vmatmul.mubr.bf16.gmra.mrb[0].mxu0 %v648
        %v918 = vpop.f32.mrb[0].mxu0
        %v919 = vadd.f32 0.0, %v918
        %v920 = vpop.f32.mrb[0].mxu0
        %v921 = vpop.f32.mrb[0].mxu0
        %v922 = vadd.f32 0.0, %v921
        %v923 = vpop.f32.mrb[0].mxu0
        %924 = vmatprep.mubr.bf16.mxu0 %v652
        %925 = vmatmul.mubr.bf16.gmra.mrb[0].mxu0 %v651
        %v926 = vpop.f32.mrb[0].mxu0
        %v927 = vadd.f32 0.0, %v926
        %v928 = vpop.f32.mrb[0].mxu0
        %v929 = vpop.f32.mrb[0].mxu0
        %v930 = vadd.f32 0.0, %v929
        %v931 = vpop.f32.mrb[0].mxu0
        %932 = vmatprep.mubr.bf16.mxu0 %v655
        %933 = vmatmul.mubr.bf16.gmra.mrb[0].mxu0 %v654
        %v934 = vpop.f32.mrb[0].mxu0
        %v935 = vadd.f32 0.0, %v934
        %v936 = vpop.f32.mrb[0].mxu0
        %v937 = vpop.f32.mrb[0].mxu0
        %v938 = vadd.f32 0.0, %v937
        %v939 = vpop.f32.mrb[0].mxu0
        %940 = vmatprep.mubr.bf16.mxu0 %v658
        %941 = vmatmul.mubr.bf16.gmra.mrb[0].mxu0 %v657
        %v942 = vpop.f32.mrb[0].mxu0
        %v943 = vadd.f32 0.0, %v942
        %v944 = vpop.f32.mrb[0].mxu0
        %v945 = vpop.f32.mrb[0].mxu0
        %v946 = vadd.f32 0.0, %v945
        %v947 = vpop.f32.mrb[0].mxu0
        %948 = vmatprep.mubr.bf16.mxu0 %v661
        %949 = vmatmul.mubr.bf16.gmra.mrb[0].mxu0 %v660
        %v950 = vpop.f32.mrb[0].mxu0
        %v951 = vadd.f32 0.0, %v950
        %v952 = vpop.f32.mrb[0].mxu0
        %v953 = vpop.f32.mrb[0].mxu0
        %v954 = vadd.f32 0.0, %v953
        %v955 = vpop.f32.mrb[0].mxu0
        %956 = vmatprep.mubr.bf16.mxu0 %v664
        %957 = vmatmul.mubr.bf16.gmra.mrb[0].mxu0 %v663
        %v958 = vpop.f32.mrb[0].mxu0
        %v959 = vadd.f32 0.0, %v958
        %v960 = vpop.f32.mrb[0].mxu0
        %v961 = vpop.f32.mrb[0].mxu0
        %v962 = vadd.f32 0.0, %v961
        %v963 = vpop.f32.mrb[0].mxu0
        %964 = vmatprep.mubr.bf16.mxu0 %v667
        %965 = vmatmul.mubr.bf16.gmra.mrb[0].mxu0 %v666
        %v966 = vpop.f32.mrb[0].mxu0
        %v967 = vadd.f32 0.0, %v966
        %v968 = vpop.f32.mrb[0].mxu0
        %v969 = vpop.f32.mrb[0].mxu0
        %v970 = vadd.f32 0.0, %v969
        %v971 = vpop.f32.mrb[0].mxu0
        %972 = vmatprep.mubr.bf16.mxu0 %v670
        %973 = vmatmul.mubr.bf16.gmra.mrb[0].mxu0 %v669
        %v974 = vpop.f32.mrb[0].mxu0
        %v975 = vadd.f32 0.0, %v974
        %v976 = vpop.f32.mrb[0].mxu0
        %v977 = vpop.f32.mrb[0].mxu0
        %v978 = vadd.f32 0.0, %v977
        %v979 = vpop.f32.mrb[0].mxu0
        %980 = vdwg.mxu0
        %981 = vmatprep.subr.bf16.mxu0 0
        %982 = vmatpush1.bf16.msra.mxu0 %v820
        %983 = vmatprep.subr.bf16.mxu0 0
        %984 = vmatpush1.bf16.msra.mxu0 %v821
        %985 = vmatprep.subr.bf16.mxu0 0
        %986 = vmatpush1.bf16.msra.mxu0 %v822
        %987 = vmatprep.subr.bf16.mxu0 0
        %988 = vmatpush1.bf16.msra.mxu0 %v823
        %989 = vmatprep.subr.bf16.mxu0 0
        %990 = vmatpush1.bf16.msra.mxu0 %v824
        %991 = vmatprep.subr.bf16.mxu0 0
        %992 = vmatpush1.bf16.msra.mxu0 %v825
        %993 = vmatprep.subr.bf16.mxu0 0
        %994 = vmatpush1.bf16.msra.mxu0 %v826
        %995 = vmatprep.subr.bf16.mxu0 0
        %996 = vmatpush1.bf16.msra.mxu0 %v827
        %997 = vmatprep.subr.bf16.mxu0 0
        %998 = vmatpush1.bf16.msra.mxu0 0
        %999 = vmatprep.subr.bf16.mxu0 0
        %1000 = vmatpush1.bf16.msra.mxu0 0
        %1001 = vmatprep.subr.bf16.mxu0 0
        %1002 = vmatpush1.bf16.msra.mxu0 0
        %1003 = vmatprep.subr.bf16.mxu0 0
        %1004 = vmatpush1.bf16.msra.mxu0 0
        %1005 = vmatprep.subr.bf16.mxu0 0
        %1006 = vmatpush1.bf16.msra.mxu0 0
        %1007 = vmatprep.subr.bf16.mxu0 0
        %1008 = vmatpush1.bf16.msra.mxu0 0
        %1009 = vmatprep.subr.bf16.mxu0 0
        %1010 = vmatpush1.bf16.msra.mxu0 0
        %1011 = vmatprep.subr.bf16.mxu0 0
        %1012 = vmatpush1.bf16.msra.mxu0 0
        %1013 = vmatprep.mubr.bf16.mxu0 0
        %1014 = vmatmul.mubr.bf16.gmra.mrb[0].mxu0 %v638
        %v1015 = vpop.f32.mrb[0].mxu0
        %v1016 = vadd.f32 %v887, %v1015
        %v1017 = vpop.f32.mrb[0].mxu0
        %v1018 = vpop.f32.mrb[0].mxu0
        %v1019 = vadd.f32 %v890, %v1018
        %v1020 = vpop.f32.mrb[0].mxu0
        %1021 = vmatprep.mubr.bf16.mxu0 0
        %1022 = vmatmul.mubr.bf16.gmra.mrb[0].mxu0 %v641
        %v1023 = vpop.f32.mrb[0].mxu0
        %v1024 = vadd.f32 %v895, %v1023
        %v1025 = vpop.f32.mrb[0].mxu0
        %v1026 = vpop.f32.mrb[0].mxu0
        %v1027 = vadd.f32 %v898, %v1026
        %v1028 = vpop.f32.mrb[0].mxu0
        %1029 = vmatprep.mubr.bf16.mxu0 0
        %1030 = vmatmul.mubr.bf16.gmra.mrb[0].mxu0 %v644
        %v1031 = vpop.f32.mrb[0].mxu0
        %v1032 = vadd.f32 %v903, %v1031
        %v1033 = vpop.f32.mrb[0].mxu0
        %v1034 = vpop.f32.mrb[0].mxu0
        %v1035 = vadd.f32 %v906, %v1034
        %v1036 = vpop.f32.mrb[0].mxu0
        %1037 = vmatprep.mubr.bf16.mxu0 0
        %1038 = vmatmul.mubr.bf16.gmra.mrb[0].mxu0 %v647
        %v1039 = vpop.f32.mrb[0].mxu0
        %v1040 = vadd.f32 %v911, %v1039
        %v1041 = vpop.f32.mrb[0].mxu0
        %v1042 = vpop.f32.mrb[0].mxu0
        %v1043 = vadd.f32 %v914, %v1042
        %v1044 = vpop.f32.mrb[0].mxu0
        %1045 = vmatprep.mubr.bf16.mxu0 0
        %1046 = vmatmul.mubr.bf16.gmra.mrb[0].mxu0 %v650
        %v1047 = vpop.f32.mrb[0].mxu0
        %v1048 = vadd.f32 %v919, %v1047
        %v1049 = vpop.f32.mrb[0].mxu0
        %v1050 = vpop.f32.mrb[0].mxu0
        %v1051 = vadd.f32 %v922, %v1050
        %v1052 = vpop.f32.mrb[0].mxu0
        %1053 = vmatprep.mubr.bf16.mxu0 0
        %1054 = vmatmul.mubr.bf16.gmra.mrb[0].mxu0 %v653
        %v1055 = vpop.f32.mrb[0].mxu0
        %v1056 = vadd.f32 %v927, %v1055
        %v1057 = vpop.f32.mrb[0].mxu0
        %v1058 = vpop.f32.mrb[0].mxu0
        %v1059 = vadd.f32 %v930, %v1058
        %v1060 = vpop.f32.mrb[0].mxu0
        %1061 = vmatprep.mubr.bf16.mxu0 0
        %1062 = vmatmul.mubr.bf16.gmra.mrb[0].mxu0 %v656
        %v1063 = vpop.f32.mrb[0].mxu0
        %v1064 = vadd.f32 %v935, %v1063
        %v1065 = vpop.f32.mrb[0].mxu0
        %v1066 = vpop.f32.mrb[0].mxu0
        %v1067 = vadd.f32 %v938, %v1066
        %v1068 = vpop.f32.mrb[0].mxu0
        %1069 = vmatprep.mubr.bf16.mxu0 0
        %1070 = vmatmul.mubr.bf16.gmra.mrb[0].mxu0 %v659
        %v1071 = vpop.f32.mrb[0].mxu0
        %v1072 = vadd.f32 %v943, %v1071
        %v1073 = vpop.f32.mrb[0].mxu0
        %v1074 = vpop.f32.mrb[0].mxu0
        %v1075 = vadd.f32 %v946, %v1074
        %v1076 = vpop.f32.mrb[0].mxu0
        %1077 = vmatprep.mubr.bf16.mxu0 0
        %1078 = vmatmul.mubr.bf16.gmra.mrb[0].mxu0 %v662
        %v1079 = vpop.f32.mrb[0].mxu0
        %v1080 = vadd.f32 %v951, %v1079
        %v1081 = vpop.f32.mrb[0].mxu0
        %v1082 = vpop.f32.mrb[0].mxu0
        %v1083 = vadd.f32 %v954, %v1082
        %v1084 = vpop.f32.mrb[0].mxu0
        %1085 = vmatprep.mubr.bf16.mxu0 0
        %1086 = vmatmul.mubr.bf16.gmra.mrb[0].mxu0 %v665
        %v1087 = vpop.f32.mrb[0].mxu0
        %v1088 = vadd.f32 %v959, %v1087
        %v1089 = vpop.f32.mrb[0].mxu0
        %v1090 = vpop.f32.mrb[0].mxu0
        %v1091 = vadd.f32 %v962, %v1090
        %v1092 = vpop.f32.mrb[0].mxu0
        %1093 = vmatprep.mubr.bf16.mxu0 0
        %1094 = vmatmul.mubr.bf16.gmra.mrb[0].mxu0 %v668
        %v1095 = vpop.f32.mrb[0].mxu0
        %v1096 = vadd.f32 %v967, %v1095
        %v1097 = vpop.f32.mrb[0].mxu0
        %v1098 = vpop.f32.mrb[0].mxu0
        %v1099 = vadd.f32 %v970, %v1098
        %v1100 = vpop.f32.mrb[0].mxu0
        %1101 = vmatprep.mubr.bf16.mxu0 0
        %1102 = vmatmul.mubr.bf16.gmra.mrb[0].mxu0 %v671
        %v1103 = vpop.f32.mrb[0].mxu0
        %v1104 = vadd.f32 %v975, %v1103
        %v1105 = vpop.f32.mrb[0].mxu0
        %v1106 = vpop.f32.mrb[0].mxu0
        %v1107 = vadd.f32 %v978, %v1106
        %v1108 = vpop.f32.mrb[0].mxu0
        %1109 = vdwg.mxu0
        %v1110 = vadd.f32 %v444, %v1016
        %v1111 = vadd.f32 %v445, %v1019
        %v1112 = vadd.f32 %v446, %v1024
        %v1113 = vadd.f32 %v447, %v1027
        %v1114 = vadd.f32 %v448, %v1032
        %v1115 = vadd.f32 %v449, %v1035
        %v1116 = vadd.f32 %v450, %v1040
        %v1117 = vadd.f32 %v451, %v1043
        %v1118 = vadd.f32 %v452, %v1048
        %v1119 = vadd.f32 %v453, %v1051
        %v1120 = vadd.f32 %v454, %v1056
        %v1121 = vadd.f32 %v455, %v1059
        %v1122 = vadd.f32 %v456, %v1064
        %v1123 = vadd.f32 %v457, %v1067
        %v1124 = vadd.f32 %v458, %v1072
        %v1125 = vadd.f32 %v459, %v1075
        %v1126 = vadd.f32 %v460, %v1080
        %v1127 = vadd.f32 %v461, %v1083
        %v1128 = vadd.f32 %v462, %v1088
        %v1129 = vadd.f32 %v463, %v1091
        %v1130 = vadd.f32 %v464, %v1096
        %v1131 = vadd.f32 %v465, %v1099
        %v1132 = vadd.f32 %v466, %v1104
        %v1133 = vadd.f32 %v467, %v1107
        %1134 = vst [vmem:[#allocation2] sm:$0xff] %v1110
        %1135 = vst [vmem:[#allocation2 + $0x8] sm:$0xff] %v1111
        %1136 = vst [vmem:[#allocation2 + $0x10] sm:$0xff] %v1112
        %1137 = vst [vmem:[#allocation2 + $0x18] sm:$0xff] %v1113
        %1138 = vst [vmem:[#allocation2 + $0x20] sm:$0xff] %v1114
        %1139 = vst [vmem:[#allocation2 + $0x28] sm:$0xff] %v1115
        %1140 = vst [vmem:[#allocation2 + $0x30] sm:$0xff] %v1116
        %1141 = vst [vmem:[#allocation2 + $0x38] sm:$0xff] %v1117
        %1142 = vst [vmem:[#allocation2 + $0x40] sm:$0xff] %v1118
        %1143 = vst [vmem:[#allocation2 + $0x48] sm:$0xff] %v1119
        %1144 = vst [vmem:[#allocation2 + $0x50] sm:$0xff] %v1120
        %1145 = vst [vmem:[#allocation2 + $0x58] sm:$0xff] %v1121
        %1146 = vst [vmem:[#allocation2 + $0x60] sm:$0xff] %v1122
        %1147 = vst [vmem:[#allocation2 + $0x68] sm:$0xff] %v1123
        %1148 = vst [vmem:[#allocation2 + $0x70] sm:$0xff] %v1124
        %1149 = vst [vmem:[#allocation2 + $0x78] sm:$0xff] %v1125
        %1150 = vst [vmem:[#allocation2 + $0x80] sm:$0xff] %v1126
        %1151 = vst [vmem:[#allocation2 + $0x88] sm:$0xff] %v1127
        %1152 = vst [vmem:[#allocation2 + $0x90] sm:$0xff] %v1128
        %1153 = vst [vmem:[#allocation2 + $0x98] sm:$0xff] %v1129
        %1154 = vst [vmem:[#allocation2 + $0xa0] sm:$0xff] %v1130
        %1155 = vst [vmem:[#allocation2 + $0xa8] sm:$0xff] %v1131
        %1156 = vst [vmem:[#allocation2 + $0xb0] sm:$0xff] %v1132
        %1157 = vst [vmem:[#allocation2 + $0xb8] sm:$0xff] %v1133
        // Predicated region
        $region69: #{tpu_custom_call.1} parent=47 // pred_check
          %p1158 = pneg %p363
        $region70: #{tpu_custom_call.1} parent=47 // pred_check_branch
          %1160 = sbr.rel (%p1158) target = $region72
        $region71: #{tpu_custom_call.1} parent=47 // pred_region
          %s1161 = sld [smem:[#allocation3]]
          %v1162 = vld [vmem:[#allocation2] sm:$0xff]
          %v1163 = vld [vmem:[#allocation2 + $0x8] sm:$0xff]
          %v1164 = vld [vmem:[#allocation2 + $0x10] sm:$0xff]
          %v1165 = vld [vmem:[#allocation2 + $0x18] sm:$0xff]
          %v1166 = vld [vmem:[#allocation2 + $0x20] sm:$0xff]
          %v1167 = vld [vmem:[#allocation2 + $0x28] sm:$0xff]
          %v1168 = vld [vmem:[#allocation2 + $0x30] sm:$0xff]
          %v1169 = vld [vmem:[#allocation2 + $0x38] sm:$0xff]
          %v1170 = vld [vmem:[#allocation2 + $0x40] sm:$0xff]
          %v1171 = vld [vmem:[#allocation2 + $0x48] sm:$0xff]
          %v1172 = vld [vmem:[#allocation2 + $0x50] sm:$0xff]
          %v1173 = vld [vmem:[#allocation2 + $0x58] sm:$0xff]
          %v1174 = vld [vmem:[#allocation2 + $0x60] sm:$0xff]
          %v1175 = vld [vmem:[#allocation2 + $0x68] sm:$0xff]
          %v1176 = vld [vmem:[#allocation2 + $0x70] sm:$0xff]
          %v1177 = vld [vmem:[#allocation2 + $0x78] sm:$0xff]
          %v1178 = vld [vmem:[#allocation2 + $0x80] sm:$0xff]
          %v1179 = vld [vmem:[#allocation2 + $0x88] sm:$0xff]
          %v1180 = vld [vmem:[#allocation2 + $0x90] sm:$0xff]
          %v1181 = vld [vmem:[#allocation2 + $0x98] sm:$0xff]
          %v1182 = vld [vmem:[#allocation2 + $0xa0] sm:$0xff]
          %v1183 = vld [vmem:[#allocation2 + $0xa8] sm:$0xff]
          %v1184 = vld [vmem:[#allocation2 + $0xb0] sm:$0xff]
          %v1185 = vld [vmem:[#allocation2 + $0xb8] sm:$0xff]
          %1210 = vrot.lane.b32.xlu0 %v1162, 64
          %v1211 = vpop.permute.xlu0 %1210
          %1212 = vrot.lane.b32.xlu0 %v1163, 64
          %v1213 = vpop.permute.xlu0 %1212
          %1214 = vrot.lane.b32.xlu0 %v1164, 64
          %v1215 = vpop.permute.xlu0 %1214
          %1216 = vrot.lane.b32.xlu0 %v1165, 64
          %v1217 = vpop.permute.xlu0 %1216
          %1218 = vrot.lane.b32.xlu0 %v1166, 64
          %v1219 = vpop.permute.xlu0 %1218
          %1220 = vrot.lane.b32.xlu0 %v1167, 64
          %v1221 = vpop.permute.xlu0 %1220
          %1222 = vrot.lane.b32.xlu0 %v1168, 64
          %v1223 = vpop.permute.xlu0 %1222
          %1224 = vrot.lane.b32.xlu0 %v1169, 64
          %v1225 = vpop.permute.xlu0 %1224
          %1226 = vrot.lane.b32.xlu0 %v1170, 64
          %v1227 = vpop.permute.xlu0 %1226
          %1228 = vrot.lane.b32.xlu0 %v1171, 64
          %v1229 = vpop.permute.xlu0 %1228
          %1230 = vrot.lane.b32.xlu0 %v1172, 64
          %v1231 = vpop.permute.xlu0 %1230
          %1232 = vrot.lane.b32.xlu0 %v1173, 64
          %v1233 = vpop.permute.xlu0 %1232
          %1234 = vrot.lane.b32.xlu0 %v1174, 64
          %v1235 = vpop.permute.xlu0 %1234
          %1236 = vrot.lane.b32.xlu0 %v1175, 64
          %v1237 = vpop.permute.xlu0 %1236
          %1238 = vrot.lane.b32.xlu0 %v1176, 64
          %v1239 = vpop.permute.xlu0 %1238
          %1240 = vrot.lane.b32.xlu0 %v1177, 64
          %v1241 = vpop.permute.xlu0 %1240
          %1242 = vrot.lane.b32.xlu0 %v1178, 64
          %v1243 = vpop.permute.xlu0 %1242
          %1244 = vrot.lane.b32.xlu0 %v1179, 64
          %v1245 = vpop.permute.xlu0 %1244
          %1246 = vrot.lane.b32.xlu0 %v1180, 64
          %v1247 = vpop.permute.xlu0 %1246
          %1248 = vrot.lane.b32.xlu0 %v1181, 64
          %v1249 = vpop.permute.xlu0 %1248
          %1250 = vrot.lane.b32.xlu0 %v1182, 64
          %v1251 = vpop.permute.xlu0 %1250
          %1252 = vrot.lane.b32.xlu0 %v1183, 64
          %v1253 = vpop.permute.xlu0 %1252
          %1254 = vrot.lane.b32.xlu0 %v1184, 64
          %v1255 = vpop.permute.xlu0 %1254
          %1256 = vrot.lane.b32.xlu0 %v1185, 64
          %v1257 = vpop.permute.xlu0 %1256
          %v1282 = vadd.f32 %v1162, %v1211
          %v1283 = vadd.f32 %v1163, %v1213
          %v1284 = vadd.f32 %v1164, %v1215
          %v1285 = vadd.f32 %v1165, %v1217
          %v1286 = vadd.f32 %v1166, %v1219
          %v1287 = vadd.f32 %v1167, %v1221
          %v1288 = vadd.f32 %v1168, %v1223
          %v1289 = vadd.f32 %v1169, %v1225
          %v1290 = vadd.f32 %v1170, %v1227
          %v1291 = vadd.f32 %v1171, %v1229
          %v1292 = vadd.f32 %v1172, %v1231
          %v1293 = vadd.f32 %v1173, %v1233
          %v1294 = vadd.f32 %v1174, %v1235
          %v1295 = vadd.f32 %v1175, %v1237
          %v1296 = vadd.f32 %v1176, %v1239
          %v1297 = vadd.f32 %v1177, %v1241
          %v1298 = vadd.f32 %v1178, %v1243
          %v1299 = vadd.f32 %v1179, %v1245
          %v1300 = vadd.f32 %v1180, %v1247
          %v1301 = vadd.f32 %v1181, %v1249
          %v1302 = vadd.f32 %v1182, %v1251
          %v1303 = vadd.f32 %v1183, %v1253
          %v1304 = vadd.f32 %v1184, %v1255
          %v1305 = vadd.f32 %v1185, %v1257
          %s1306 = smul.u32 %s31, 192
          %s1307 = sshra.s32 %s1306, 3
          %s1308 = sand.u32 %s1306, 7
          %s1309 = smul.addr %s1307, 4
          %s1310 = scalar_lea.vmem [#allocation7], %s1309
          %v1311 = vld [vmem:[%s1310] sm:$0xf]
          %v1312 = vld [vmem:[%s1310 + $0x4] sm:$0xf]
          %v1313 = vld [vmem:[%s1310 + $0x8] sm:$0xf]
          %v1314 = vld [vmem:[%s1310 + $0xc] sm:$0xf]
          %v1315 = vld [vmem:[%s1310 + $0x10] sm:$0xf]
          %v1316 = vld [vmem:[%s1310 + $0x14] sm:$0xf]
          %v1317 = vld [vmem:[%s1310 + $0x18] sm:$0xf]
          %v1318 = vld [vmem:[%s1310 + $0x1c] sm:$0xf]
          %v1319 = vld [vmem:[%s1310 + $0x20] sm:$0xf]
          %v1320 = vld [vmem:[%s1310 + $0x24] sm:$0xf]
          %v1321 = vld [vmem:[%s1310 + $0x28] sm:$0xf]
          %v1322 = vld [vmem:[%s1310 + $0x2c] sm:$0xf]
          %v1323 = vld [vmem:[%s1310 + $0x30] sm:$0xf]
          %v1324 = vld [vmem:[%s1310 + $0x34] sm:$0xf]
          %v1325 = vld [vmem:[%s1310 + $0x38] sm:$0xf]
          %v1326 = vld [vmem:[%s1310 + $0x3c] sm:$0xf]
          %v1327 = vld [vmem:[%s1310 + $0x40] sm:$0xf]
          %v1328 = vld [vmem:[%s1310 + $0x44] sm:$0xf]
          %v1329 = vld [vmem:[%s1310 + $0x48] sm:$0xf]
          %v1330 = vld [vmem:[%s1310 + $0x4c] sm:$0xf]
          %v1331 = vld [vmem:[%s1310 + $0x50] sm:$0xf]
          %v1332 = vld [vmem:[%s1310 + $0x54] sm:$0xf]
          %v1333 = vld [vmem:[%s1310 + $0x58] sm:$0xf]
          %v1334 = vld [vmem:[%s1310 + $0x5c] sm:$0xf]
          %v1335 = vunpack.c.l.bf16 %v1311
          %v1336 = vunpack.c.l.bf16 %v1312
          %v1337 = vunpack.c.l.bf16 %v1313
          %v1338 = vunpack.c.l.bf16 %v1314
          %v1339 = vunpack.c.l.bf16 %v1315
          %v1340 = vunpack.c.l.bf16 %v1316
          %v1341 = vunpack.c.l.bf16 %v1317
          %v1342 = vunpack.c.l.bf16 %v1318
          %v1343 = vunpack.c.l.bf16 %v1319
          %v1344 = vunpack.c.l.bf16 %v1320
          %v1345 = vunpack.c.l.bf16 %v1321
          %v1346 = vunpack.c.l.bf16 %v1322
          %v1347 = vunpack.c.l.bf16 %v1323
          %v1348 = vunpack.c.l.bf16 %v1324
          %v1349 = vunpack.c.l.bf16 %v1325
          %v1350 = vunpack.c.l.bf16 %v1326
          %v1351 = vunpack.c.l.bf16 %v1327
          %v1352 = vunpack.c.l.bf16 %v1328
          %v1353 = vunpack.c.l.bf16 %v1329
          %v1354 = vunpack.c.l.bf16 %v1330
          %v1355 = vunpack.c.l.bf16 %v1331
          %v1356 = vunpack.c.l.bf16 %v1332
          %v1357 = vunpack.c.l.bf16 %v1333
          %v1358 = vunpack.c.l.bf16 %v1334
          %1383 = vrot.lane.b32.xlu0 %v1335, 64
          %v1384 = vpop.permute.xlu0 %1383
          %1385 = vrot.lane.b32.xlu0 %v1336, 64
          %v1386 = vpop.permute.xlu0 %1385
          %1387 = vrot.lane.b32.xlu0 %v1337, 64
          %v1388 = vpop.permute.xlu0 %1387
          %1389 = vrot.lane.b32.xlu0 %v1338, 64
          %v1390 = vpop.permute.xlu0 %1389
          %1391 = vrot.lane.b32.xlu0 %v1339, 64
          %v1392 = vpop.permute.xlu0 %1391
          %1393 = vrot.lane.b32.xlu0 %v1340, 64
          %v1394 = vpop.permute.xlu0 %1393
          %1395 = vrot.lane.b32.xlu0 %v1341, 64
          %v1396 = vpop.permute.xlu0 %1395
          %1397 = vrot.lane.b32.xlu0 %v1342, 64
          %v1398 = vpop.permute.xlu0 %1397
          %1399 = vrot.lane.b32.xlu0 %v1343, 64
          %v1400 = vpop.permute.xlu0 %1399
          %1401 = vrot.lane.b32.xlu0 %v1344, 64
          %v1402 = vpop.permute.xlu0 %1401
          %1403 = vrot.lane.b32.xlu0 %v1345, 64
          %v1404 = vpop.permute.xlu0 %1403
          %1405 = vrot.lane.b32.xlu0 %v1346, 64
          %v1406 = vpop.permute.xlu0 %1405
          %1407 = vrot.lane.b32.xlu0 %v1347, 64
          %v1408 = vpop.permute.xlu0 %1407
          %1409 = vrot.lane.b32.xlu0 %v1348, 64
          %v1410 = vpop.permute.xlu0 %1409
          %1411 = vrot.lane.b32.xlu0 %v1349, 64
          %v1412 = vpop.permute.xlu0 %1411
          %1413 = vrot.lane.b32.xlu0 %v1350, 64
          %v1414 = vpop.permute.xlu0 %1413
          %1415 = vrot.lane.b32.xlu0 %v1351, 64
          %v1416 = vpop.permute.xlu0 %1415
          %1417 = vrot.lane.b32.xlu0 %v1352, 64
          %v1418 = vpop.permute.xlu0 %1417
          %1419 = vrot.lane.b32.xlu0 %v1353, 64
          %v1420 = vpop.permute.xlu0 %1419
          %1421 = vrot.lane.b32.xlu0 %v1354, 64
          %v1422 = vpop.permute.xlu0 %1421
          %1423 = vrot.lane.b32.xlu0 %v1355, 64
          %v1424 = vpop.permute.xlu0 %1423
          %1425 = vrot.lane.b32.xlu0 %v1356, 64
          %v1426 = vpop.permute.xlu0 %1425
          %1427 = vrot.lane.b32.xlu0 %v1357, 64
          %v1428 = vpop.permute.xlu0 %1427
          %1429 = vrot.lane.b32.xlu0 %v1358, 64
          %v1430 = vpop.permute.xlu0 %1429
          %v1455 = vadd.f32 %v1335, %v1384
          %v1456 = vadd.f32 %v1336, %v1386
          %v1457 = vadd.f32 %v1337, %v1388
          %v1458 = vadd.f32 %v1338, %v1390
          %v1459 = vadd.f32 %v1339, %v1392
          %v1460 = vadd.f32 %v1340, %v1394
          %v1461 = vadd.f32 %v1341, %v1396
          %v1462 = vadd.f32 %v1342, %v1398
          %v1463 = vadd.f32 %v1343, %v1400
          %v1464 = vadd.f32 %v1344, %v1402
          %v1465 = vadd.f32 %v1345, %v1404
          %v1466 = vadd.f32 %v1346, %v1406
          %v1467 = vadd.f32 %v1347, %v1408
          %v1468 = vadd.f32 %v1348, %v1410
          %v1469 = vadd.f32 %v1349, %v1412
          %v1470 = vadd.f32 %v1350, %v1414
          %v1471 = vadd.f32 %v1351, %v1416
          %v1472 = vadd.f32 %v1352, %v1418
          %v1473 = vadd.f32 %v1353, %v1420
          %v1474 = vadd.f32 %v1354, %v1422
          %v1475 = vadd.f32 %v1355, %v1424
          %v1476 = vadd.f32 %v1356, %v1426
          %v1477 = vadd.f32 %v1357, %v1428
          %v1478 = vadd.f32 %v1358, %v1430
          %s1479 = sadd.f32 %s1161, 1.0
          %v1480 = vstv %s1479
          %v1481 = vmul.f32 %v1480, %v1455
          %v1482 = vmul.f32 %v1480, %v1456
          %v1483 = vmul.f32 %v1480, %v1457
          %v1484 = vmul.f32 %v1480, %v1458
          %v1485 = vmul.f32 %v1480, %v1459
          %v1486 = vmul.f32 %v1480, %v1460
          %v1487 = vmul.f32 %v1480, %v1461
          %v1488 = vmul.f32 %v1480, %v1462
          %v1489 = vmul.f32 %v1480, %v1463
          %v1490 = vmul.f32 %v1480, %v1464
          %v1491 = vmul.f32 %v1480, %v1465
          %v1492 = vmul.f32 %v1480, %v1466
          %v1493 = vmul.f32 %v1480, %v1467
          %v1494 = vmul.f32 %v1480, %v1468
          %v1495 = vmul.f32 %v1480, %v1469
          %v1496 = vmul.f32 %v1480, %v1470
          %v1497 = vmul.f32 %v1480, %v1471
          %v1498 = vmul.f32 %v1480, %v1472
          %v1499 = vmul.f32 %v1480, %v1473
          %v1500 = vmul.f32 %v1480, %v1474
          %v1501 = vmul.f32 %v1480, %v1475
          %v1502 = vmul.f32 %v1480, %v1476
          %v1503 = vmul.f32 %v1480, %v1477
          %v1504 = vmul.f32 %v1480, %v1478
          %v1505 = vadd.f32 %v1481, %v1282
          %v1506 = vadd.f32 %v1482, %v1283
          %v1507 = vadd.f32 %v1483, %v1284
          %v1508 = vadd.f32 %v1484, %v1285
          %v1509 = vadd.f32 %v1485, %v1286
          %v1510 = vadd.f32 %v1486, %v1287
          %v1511 = vadd.f32 %v1487, %v1288
          %v1512 = vadd.f32 %v1488, %v1289
          %v1513 = vadd.f32 %v1489, %v1290
          %v1514 = vadd.f32 %v1490, %v1291
          %v1515 = vadd.f32 %v1491, %v1292
          %v1516 = vadd.f32 %v1492, %v1293
          %v1517 = vadd.f32 %v1493, %v1294
          %v1518 = vadd.f32 %v1494, %v1295
          %v1519 = vadd.f32 %v1495, %v1296
          %v1520 = vadd.f32 %v1496, %v1297
          %v1521 = vadd.f32 %v1497, %v1298
          %v1522 = vadd.f32 %v1498, %v1299
          %v1523 = vadd.f32 %v1499, %v1300
          %v1524 = vadd.f32 %v1500, %v1301
          %v1525 = vadd.f32 %v1501, %v1302
          %v1526 = vadd.f32 %v1502, %v1303
          %v1527 = vadd.f32 %v1503, %v1304
          %v1528 = vadd.f32 %v1504, %v1305
          %v1529 = vld [vmem:[#allocation9] sm:$0xff]
          %v1530 = vld [vmem:[#allocation9 + $0x8] sm:$0xff]
          %v1531 = vld [vmem:[#allocation9 + $0x10] sm:$0xff]
          %v1532 = vld [vmem:[#allocation9 + $0x18] sm:$0xff]
          %v1533 = vld [vmem:[#allocation9 + $0x20] sm:$0xff]
          %v1534 = vld [vmem:[#allocation9 + $0x28] sm:$0xff]
          %v1535 = vld [vmem:[#allocation9 + $0x30] sm:$0xff]
          %v1536 = vld [vmem:[#allocation9 + $0x38] sm:$0xff]
          %v1537 = vld [vmem:[%s4] sm:$0x1]
          %v1539 = vlaneseq
          %v1540 = vshrl.u32 %v1539, 7
          %v1541 = vsub.s32 0, %v1540
          %v1542 = vrot.slane %v1537, %v1541
          %vm1544 = vcmask 523264
          %v1546 = vsel %vm1544, %v1505, 0
          %v1549 = vsel %vm1544, %v1506, 0
          %v1552 = vsel %vm1544, %v1507, 0
          %v1555 = vsel %vm1544, %v1508, 0
          %v1558 = vsel %vm1544, %v1509, 0
          %v1561 = vsel %vm1544, %v1510, 0
          %v1564 = vsel %vm1544, %v1511, 0
          %v1567 = vsel %vm1544, %v1512, 0
          %v1570 = vsel %vm1544, %v1513, 0
          %v1573 = vsel %vm1544, %v1514, 0
          %v1576 = vsel %vm1544, %v1515, 0
          %v1579 = vsel %vm1544, %v1516, 0
          %v1582 = vsel %vm1544, %v1517, 0
          %v1585 = vsel %vm1544, %v1518, 0
          %v1588 = vsel %vm1544, %v1519, 0
          %v1591 = vsel %vm1544, %v1520, 0
          %v1594 = vsel %vm1544, %v1521, 0
          %v1597 = vsel %vm1544, %v1522, 0
          %v1600 = vsel %vm1544, %v1523, 0
          %v1603 = vsel %vm1544, %v1524, 0
          %v1606 = vsel %vm1544, %v1525, 0
          %v1609 = vsel %vm1544, %v1526, 0
          %v1612 = vsel %vm1544, %v1527, 0
          %v1615 = vsel %vm1544, %v1528, 0
          %1617 = vmatprep.subr.mxu0 0.0
          %1618 = vmatpush1.msra.mxu0 %v1529
          %1619 = vmatprep.subr.mxu0 0.0
          %1620 = vmatpush1.msra.mxu0 %v1530
          %1621 = vmatprep.subr.mxu0 0.0
          %1622 = vmatpush1.msra.mxu0 %v1531
          %1623 = vmatprep.subr.mxu0 0.0
          %1624 = vmatpush1.msra.mxu0 %v1532
          %1625 = vmatprep.subr.mxu0 0.0
          %1626 = vmatpush1.msra.mxu0 %v1533
          %1627 = vmatprep.subr.mxu0 0.0
          %1628 = vmatpush1.msra.mxu0 %v1534
          %1629 = vmatprep.subr.mxu0 0.0
          %1630 = vmatpush1.msra.mxu0 %v1535
          %1631 = vmatprep.subr.mxu0 0.0
          %1632 = vmatpush1.msra.mxu0 %v1536
          %1633 = vmatprep.subr.mxu0 0.0
          %1634 = vmatpush1.msra.mxu0 0.0
          %1635 = vmatprep.subr.mxu0 0.0
          %1636 = vmatpush1.msra.mxu0 0.0
          %1637 = vmatprep.subr.mxu0 0.0
          %1638 = vmatpush1.msra.mxu0 0.0
          %1639 = vmatprep.subr.mxu0 0.0
          %1640 = vmatpush1.msra.mxu0 0.0
          %1641 = vmatprep.subr.mxu0 0.0
          %1642 = vmatpush1.msra.mxu0 0.0
          %1643 = vmatprep.subr.mxu0 0.0
          %1644 = vmatpush1.msra.mxu0 0.0
          %1645 = vmatprep.subr.mxu0 0.0
          %1646 = vmatpush1.msra.mxu0 0.0
          %1647 = vmatprep.subr.mxu0 0.0
          %1648 = vmatpush1.msra.mxu0 0.0
          %1649 = vmatprep.subr.mxu0 0.0
          %1650 = vmatpush1.msra.mxu0 0.0
          %1651 = vmatprep.subr.mxu0 0.0
          %1652 = vmatpush1.msra.mxu0 0.0
          %1653 = vmatprep.subr.mxu0 0.0
          %1654 = vmatpush1.msra.mxu0 0.0
          %1655 = vmatprep.subr.mxu0 0.0
          %1656 = vmatpush1.msra.mxu0 0.0
          %1657 = vmatprep.subr.mxu0 0.0
          %1658 = vmatpush1.msra.mxu0 0.0
          %1659 = vmatprep.subr.mxu0 0.0
          %1660 = vmatpush1.msra.mxu0 0.0
          %1661 = vmatprep.subr.mxu0 0.0
          %1662 = vmatpush1.msra.mxu0 0.0
          %1663 = vmatprep.subr.mxu0 0.0
          %1664 = vmatpush1.msra.mxu0 0.0
          %1665 = vmatprep.subr.mxu0 0.0
          %1666 = vmatpush1.msra.mxu0 0.0
          %1667 = vmatprep.subr.mxu0 0.0
          %1668 = vmatpush1.msra.mxu0 0.0
          %1669 = vmatprep.subr.mxu0 0.0
          %1670 = vmatpush1.msra.mxu0 0.0
          %1671 = vmatprep.subr.mxu0 0.0
          %1672 = vmatpush1.msra.mxu0 0.0
          %1673 = vmatprep.subr.mxu0 0.0
          %1674 = vmatpush1.msra.mxu0 0.0
          %1675 = vmatprep.subr.mxu0 0.0
          %1676 = vmatpush1.msra.mxu0 0.0
          %1677 = vmatprep.subr.mxu0 0.0
          %1678 = vmatpush1.msra.mxu0 0.0
          %1679 = vmatprep.subr.mxu0 0.0
          %1680 = vmatpush1.msra.mxu0 0.0
          %1681 = vmatprep.mubr.f32.mxu0 0.0
          %1682 = vmatmul.mubr.f32.gmra.mrb[0].mxu0 %v1546
          %v1683 = vpop.f32.mrb[0].mxu0
          %v1684 = vadd.f32 %v1542, %v1683
          %v1685 = vpop.f32.mrb[0].mxu0
          %1686 = vmatprep.mubr.f32.mxu0 0.0
          %1687 = vmatmul.mubr.f32.gmra.mrb[0].mxu0 %v1549
          %v1688 = vpop.f32.mrb[0].mxu0
          %v1689 = vadd.f32 %v1542, %v1688
          %v1690 = vpop.f32.mrb[0].mxu0
          %1691 = vmatprep.mubr.f32.mxu0 0.0
          %1692 = vmatmul.mubr.f32.gmra.mrb[0].mxu0 %v1552
          %v1693 = vpop.f32.mrb[0].mxu0
          %v1694 = vadd.f32 %v1542, %v1693
          %v1695 = vpop.f32.mrb[0].mxu0
          %1696 = vmatprep.mubr.f32.mxu0 0.0
          %1697 = vmatmul.mubr.f32.gmra.mrb[0].mxu0 %v1555
          %v1698 = vpop.f32.mrb[0].mxu0
          %v1699 = vadd.f32 %v1542, %v1698
          %v1700 = vpop.f32.mrb[0].mxu0
          %1701 = vmatprep.mubr.f32.mxu0 0.0
          %1702 = vmatmul.mubr.f32.gmra.mrb[0].mxu0 %v1558
          %v1703 = vpop.f32.mrb[0].mxu0
          %v1704 = vadd.f32 %v1542, %v1703
          %v1705 = vpop.f32.mrb[0].mxu0
          %1706 = vmatprep.mubr.f32.mxu0 0.0
          %1707 = vmatmul.mubr.f32.gmra.mrb[0].mxu0 %v1561
          %v1708 = vpop.f32.mrb[0].mxu0
          %v1709 = vadd.f32 %v1542, %v1708
          %v1710 = vpop.f32.mrb[0].mxu0
          %1711 = vmatprep.mubr.f32.mxu0 0.0
          %1712 = vmatmul.mubr.f32.gmra.mrb[0].mxu0 %v1564
          %v1713 = vpop.f32.mrb[0].mxu0
          %v1714 = vadd.f32 %v1542, %v1713
          %v1715 = vpop.f32.mrb[0].mxu0
          %1716 = vmatprep.mubr.f32.mxu0 0.0
          %1717 = vmatmul.mubr.f32.gmra.mrb[0].mxu0 %v1567
          %v1718 = vpop.f32.mrb[0].mxu0
          %v1719 = vadd.f32 %v1542, %v1718
          %v1720 = vpop.f32.mrb[0].mxu0
          %1721 = vmatprep.mubr.f32.mxu0 0.0
          %1722 = vmatmul.mubr.f32.gmra.mrb[0].mxu0 %v1570
          %v1723 = vpop.f32.mrb[0].mxu0
          %v1724 = vadd.f32 %v1542, %v1723
          %v1725 = vpop.f32.mrb[0].mxu0
          %1726 = vmatprep.mubr.f32.mxu0 0.0
          %1727 = vmatmul.mubr.f32.gmra.mrb[0].mxu0 %v1573
          %v1728 = vpop.f32.mrb[0].mxu0
          %v1729 = vadd.f32 %v1542, %v1728
          %v1730 = vpop.f32.mrb[0].mxu0
          %1731 = vmatprep.mubr.f32.mxu0 0.0
          %1732 = vmatmul.mubr.f32.gmra.mrb[0].mxu0 %v1576
          %v1733 = vpop.f32.mrb[0].mxu0
          %v1734 = vadd.f32 %v1542, %v1733
          %v1735 = vpop.f32.mrb[0].mxu0
          %1736 = vmatprep.mubr.f32.mxu0 0.0
          %1737 = vmatmul.mubr.f32.gmra.mrb[0].mxu0 %v1579
          %v1738 = vpop.f32.mrb[0].mxu0
          %v1739 = vadd.f32 %v1542, %v1738
          %v1740 = vpop.f32.mrb[0].mxu0
          %1741 = vmatprep.mubr.f32.mxu0 0.0
          %1742 = vmatmul.mubr.f32.gmra.mrb[0].mxu0 %v1582
          %v1743 = vpop.f32.mrb[0].mxu0
          %v1744 = vadd.f32 %v1542, %v1743
          %v1745 = vpop.f32.mrb[0].mxu0
          %1746 = vmatprep.mubr.f32.mxu0 0.0
          %1747 = vmatmul.mubr.f32.gmra.mrb[0].mxu0 %v1585
          %v1748 = vpop.f32.mrb[0].mxu0
          %v1749 = vadd.f32 %v1542, %v1748
          %v1750 = vpop.f32.mrb[0].mxu0
          %1751 = vmatprep.mubr.f32.mxu0 0.0
          %1752 = vmatmul.mubr.f32.gmra.mrb[0].mxu0 %v1588
          %v1753 = vpop.f32.mrb[0].mxu0
          %v1754 = vadd.f32 %v1542, %v1753
          %v1755 = vpop.f32.mrb[0].mxu0
          %1756 = vmatprep.mubr.f32.mxu0 0.0
          %1757 = vmatmul.mubr.f32.gmra.mrb[0].mxu0 %v1591
          %v1758 = vpop.f32.mrb[0].mxu0
          %v1759 = vadd.f32 %v1542, %v1758
          %v1760 = vpop.f32.mrb[0].mxu0
          %1761 = vmatprep.mubr.f32.mxu0 0.0
          %1762 = vmatmul.mubr.f32.gmra.mrb[0].mxu0 %v1594
          %v1763 = vpop.f32.mrb[0].mxu0
          %v1764 = vadd.f32 %v1542, %v1763
          %v1765 = vpop.f32.mrb[0].mxu0
          %1766 = vmatprep.mubr.f32.mxu0 0.0
          %1767 = vmatmul.mubr.f32.gmra.mrb[0].mxu0 %v1597
          %v1768 = vpop.f32.mrb[0].mxu0
          %v1769 = vadd.f32 %v1542, %v1768
          %v1770 = vpop.f32.mrb[0].mxu0
          %1771 = vmatprep.mubr.f32.mxu0 0.0
          %1772 = vmatmul.mubr.f32.gmra.mrb[0].mxu0 %v1600
          %v1773 = vpop.f32.mrb[0].mxu0
          %v1774 = vadd.f32 %v1542, %v1773
          %v1775 = vpop.f32.mrb[0].mxu0
          %1776 = vmatprep.mubr.f32.mxu0 0.0
          %1777 = vmatmul.mubr.f32.gmra.mrb[0].mxu0 %v1603
          %v1778 = vpop.f32.mrb[0].mxu0
          %v1779 = vadd.f32 %v1542, %v1778
          %v1780 = vpop.f32.mrb[0].mxu0
          %1781 = vmatprep.mubr.f32.mxu0 0.0
          %1782 = vmatmul.mubr.f32.gmra.mrb[0].mxu0 %v1606
          %v1783 = vpop.f32.mrb[0].mxu0
          %v1784 = vadd.f32 %v1542, %v1783
          %v1785 = vpop.f32.mrb[0].mxu0
          %1786 = vmatprep.mubr.f32.mxu0 0.0
          %1787 = vmatmul.mubr.f32.gmra.mrb[0].mxu0 %v1609
          %v1788 = vpop.f32.mrb[0].mxu0
          %v1789 = vadd.f32 %v1542, %v1788
          %v1790 = vpop.f32.mrb[0].mxu0
          %1791 = vmatprep.mubr.f32.mxu0 0.0
          %1792 = vmatmul.mubr.f32.gmra.mrb[0].mxu0 %v1612
          %v1793 = vpop.f32.mrb[0].mxu0
          %v1794 = vadd.f32 %v1542, %v1793
          %v1795 = vpop.f32.mrb[0].mxu0
          %1796 = vmatprep.mubr.f32.mxu0 0.0
          %1797 = vmatmul.mubr.f32.gmra.mrb[0].mxu0 %v1615
          %v1798 = vpop.f32.mrb[0].mxu0
          %v1799 = vadd.f32 %v1542, %v1798
          %v1800 = vpop.f32.mrb[0].mxu0
          %1801 = vdwg.mxu0
          %v1802 = vmax.f32 %v1684, 0.0
          %v1803 = vmax.f32 %v1689, 0.0
          %v1804 = vmax.f32 %v1694, 0.0
          %v1805 = vmax.f32 %v1699, 0.0
          %v1806 = vmax.f32 %v1704, 0.0
          %v1807 = vmax.f32 %v1709, 0.0
          %v1808 = vmax.f32 %v1714, 0.0
          %v1809 = vmax.f32 %v1719, 0.0
          %v1810 = vmax.f32 %v1724, 0.0
          %v1811 = vmax.f32 %v1729, 0.0
          %v1812 = vmax.f32 %v1734, 0.0
          %v1813 = vmax.f32 %v1739, 0.0
          %v1814 = vmax.f32 %v1744, 0.0
          %v1815 = vmax.f32 %v1749, 0.0
          %v1816 = vmax.f32 %v1754, 0.0
          %v1817 = vmax.f32 %v1759, 0.0
          %v1818 = vmax.f32 %v1764, 0.0
          %v1819 = vmax.f32 %v1769, 0.0
          %v1820 = vmax.f32 %v1774, 0.0
          %v1821 = vmax.f32 %v1779, 0.0
          %v1822 = vmax.f32 %v1784, 0.0
          %v1823 = vmax.f32 %v1789, 0.0
          %v1824 = vmax.f32 %v1794, 0.0
          %v1825 = vmax.f32 %v1799, 0.0
          %v1826 = vld [vmem:[#allocation10] sm:$0xff]
          %v1827 = vld [vmem:[#allocation10 + $0x8] sm:$0xff]
          %v1828 = vld [vmem:[#allocation10 + $0x10] sm:$0xff]
          %v1829 = vld [vmem:[#allocation10 + $0x18] sm:$0xff]
          %v1830 = vld [vmem:[#allocation10 + $0x20] sm:$0xff]
          %v1831 = vld [vmem:[#allocation10 + $0x28] sm:$0xff]
          %v1832 = vld [vmem:[#allocation10 + $0x30] sm:$0xff]
          %v1833 = vld [vmem:[#allocation10 + $0x38] sm:$0xff]
          %v1834 = vld [vmem:[#allocation10 + $0x40] sm:$0xff]
          %v1835 = vld [vmem:[#allocation10 + $0x48] sm:$0xff]
          %v1836 = vld [vmem:[#allocation10 + $0x50] sm:$0xff]
          %v1837 = vld [vmem:[#allocation10 + $0x58] sm:$0xff]
          %v1838 = vld [vmem:[#allocation10 + $0x60] sm:$0xff]
          %v1839 = vld [vmem:[#allocation10 + $0x68] sm:$0xff]
          %v1840 = vld [vmem:[#allocation10 + $0x70] sm:$0xff]
          %v1841 = vld [vmem:[#allocation10 + $0x78] sm:$0xff]
          %v1842 = vld [vmem:[%s6] sm:$0x1]
          %v1844 = vlaneseq
          %v1845 = vshrl.u32 %v1844, 7
          %v1846 = vsub.s32 0, %v1845
          %v1847 = vrot.slane %v1842, %v1846
          %1849 = vmatprep.subr.mxu0 0.0
          %1850 = vmatpush1.msra.mxu0 %v1826
          %1851 = vmatprep.subr.mxu0 0.0
          %1852 = vmatpush1.msra.mxu0 %v1827
          %1853 = vmatprep.subr.mxu0 0.0
          %1854 = vmatpush1.msra.mxu0 %v1828
          %1855 = vmatprep.subr.mxu0 0.0
          %1856 = vmatpush1.msra.mxu0 %v1829
          %1857 = vmatprep.subr.mxu0 0.0
          %1858 = vmatpush1.msra.mxu0 %v1830
          %1859 = vmatprep.subr.mxu0 0.0
          %1860 = vmatpush1.msra.mxu0 %v1831
          %1861 = vmatprep.subr.mxu0 0.0
          %1862 = vmatpush1.msra.mxu0 %v1832
          %1863 = vmatprep.subr.mxu0 0.0
          %1864 = vmatpush1.msra.mxu0 %v1833
          %1865 = vmatprep.subr.mxu0 0.0
          %1866 = vmatpush1.msra.mxu0 %v1834
          %1867 = vmatprep.subr.mxu0 0.0
          %1868 = vmatpush1.msra.mxu0 %v1835
          %1869 = vmatprep.subr.mxu0 0.0
          %1870 = vmatpush1.msra.mxu0 %v1836
          %1871 = vmatprep.subr.mxu0 0.0
          %1872 = vmatpush1.msra.mxu0 %v1837
          %1873 = vmatprep.subr.mxu0 0.0
          %1874 = vmatpush1.msra.mxu0 %v1838
          %1875 = vmatprep.subr.mxu0 0.0
          %1876 = vmatpush1.msra.mxu0 %v1839
          %1877 = vmatprep.subr.mxu0 0.0
          %1878 = vmatpush1.msra.mxu0 %v1840
          %1879 = vmatprep.subr.mxu0 0.0
          %1880 = vmatpush1.msra.mxu0 %v1841
          %1881 = vmatprep.subr.mxu0 0.0
          %1882 = vmatpush1.msra.mxu0 0.0
          %1883 = vmatprep.subr.mxu0 0.0
          %1884 = vmatpush1.msra.mxu0 0.0
          %1885 = vmatprep.subr.mxu0 0.0
          %1886 = vmatpush1.msra.mxu0 0.0
          %1887 = vmatprep.subr.mxu0 0.0
          %1888 = vmatpush1.msra.mxu0 0.0
          %1889 = vmatprep.subr.mxu0 0.0
          %1890 = vmatpush1.msra.mxu0 0.0
          %1891 = vmatprep.subr.mxu0 0.0
          %1892 = vmatpush1.msra.mxu0 0.0
          %1893 = vmatprep.subr.mxu0 0.0
          %1894 = vmatpush1.msra.mxu0 0.0
          %1895 = vmatprep.subr.mxu0 0.0
          %1896 = vmatpush1.msra.mxu0 0.0
          %1897 = vmatprep.subr.mxu0 0.0
          %1898 = vmatpush1.msra.mxu0 0.0
          %1899 = vmatprep.subr.mxu0 0.0
          %1900 = vmatpush1.msra.mxu0 0.0
          %1901 = vmatprep.subr.mxu0 0.0
          %1902 = vmatpush1.msra.mxu0 0.0
          %1903 = vmatprep.subr.mxu0 0.0
          %1904 = vmatpush1.msra.mxu0 0.0
          %1905 = vmatprep.subr.mxu0 0.0
          %1906 = vmatpush1.msra.mxu0 0.0
          %1907 = vmatprep.subr.mxu0 0.0
          %1908 = vmatpush1.msra.mxu0 0.0
          %1909 = vmatprep.subr.mxu0 0.0
          %1910 = vmatpush1.msra.mxu0 0.0
          %1911 = vmatprep.subr.mxu0 0.0
          %1912 = vmatpush1.msra.mxu0 0.0
          %1913 = vmatprep.mubr.f32.mxu0 0.0
          %1914 = vmatmul.mubr.f32.gmra.mrb[0].mxu0 %v1802
          %v1915 = vpop.f32.mrb[0].mxu0
          %v1916 = vadd.f32 %v1847, %v1915
          %v1917 = vpop.f32.mrb[0].mxu0
          %1918 = vmatprep.mubr.f32.mxu0 0.0
          %1919 = vmatmul.mubr.f32.gmra.mrb[0].mxu0 %v1803
          %v1920 = vpop.f32.mrb[0].mxu0
          %v1921 = vadd.f32 %v1847, %v1920
          %v1922 = vpop.f32.mrb[0].mxu0
          %1923 = vmatprep.mubr.f32.mxu0 0.0
          %1924 = vmatmul.mubr.f32.gmra.mrb[0].mxu0 %v1804
          %v1925 = vpop.f32.mrb[0].mxu0
          %v1926 = vadd.f32 %v1847, %v1925
          %v1927 = vpop.f32.mrb[0].mxu0
          %1928 = vmatprep.mubr.f32.mxu0 0.0
          %1929 = vmatmul.mubr.f32.gmra.mrb[0].mxu0 %v1805
          %v1930 = vpop.f32.mrb[0].mxu0
          %v1931 = vadd.f32 %v1847, %v1930
          %v1932 = vpop.f32.mrb[0].mxu0
          %1933 = vmatprep.mubr.f32.mxu0 0.0
          %1934 = vmatmul.mubr.f32.gmra.mrb[0].mxu0 %v1806
          %v1935 = vpop.f32.mrb[0].mxu0
          %v1936 = vadd.f32 %v1847, %v1935
          %v1937 = vpop.f32.mrb[0].mxu0
          %1938 = vmatprep.mubr.f32.mxu0 0.0
          %1939 = vmatmul.mubr.f32.gmra.mrb[0].mxu0 %v1807
          %v1940 = vpop.f32.mrb[0].mxu0
          %v1941 = vadd.f32 %v1847, %v1940
          %v1942 = vpop.f32.mrb[0].mxu0
          %1943 = vmatprep.mubr.f32.mxu0 0.0
          %1944 = vmatmul.mubr.f32.gmra.mrb[0].mxu0 %v1808
          %v1945 = vpop.f32.mrb[0].mxu0
          %v1946 = vadd.f32 %v1847, %v1945
          %v1947 = vpop.f32.mrb[0].mxu0
          %1948 = vmatprep.mubr.f32.mxu0 0.0
          %1949 = vmatmul.mubr.f32.gmra.mrb[0].mxu0 %v1809
          %v1950 = vpop.f32.mrb[0].mxu0
          %v1951 = vadd.f32 %v1847, %v1950
          %v1952 = vpop.f32.mrb[0].mxu0
          %1953 = vmatprep.mubr.f32.mxu0 0.0
          %1954 = vmatmul.mubr.f32.gmra.mrb[0].mxu0 %v1810
          %v1955 = vpop.f32.mrb[0].mxu0
          %v1956 = vadd.f32 %v1847, %v1955
          %v1957 = vpop.f32.mrb[0].mxu0
          %1958 = vmatprep.mubr.f32.mxu0 0.0
          %1959 = vmatmul.mubr.f32.gmra.mrb[0].mxu0 %v1811
          %v1960 = vpop.f32.mrb[0].mxu0
          %v1961 = vadd.f32 %v1847, %v1960
          %v1962 = vpop.f32.mrb[0].mxu0
          %1963 = vmatprep.mubr.f32.mxu0 0.0
          %1964 = vmatmul.mubr.f32.gmra.mrb[0].mxu0 %v1812
          %v1965 = vpop.f32.mrb[0].mxu0
          %v1966 = vadd.f32 %v1847, %v1965
          %v1967 = vpop.f32.mrb[0].mxu0
          %1968 = vmatprep.mubr.f32.mxu0 0.0
          %1969 = vmatmul.mubr.f32.gmra.mrb[0].mxu0 %v1813
          %v1970 = vpop.f32.mrb[0].mxu0
          %v1971 = vadd.f32 %v1847, %v1970
          %v1972 = vpop.f32.mrb[0].mxu0
          %1973 = vmatprep.mubr.f32.mxu0 0.0
          %1974 = vmatmul.mubr.f32.gmra.mrb[0].mxu0 %v1814
          %v1975 = vpop.f32.mrb[0].mxu0
          %v1976 = vadd.f32 %v1847, %v1975
          %v1977 = vpop.f32.mrb[0].mxu0
          %1978 = vmatprep.mubr.f32.mxu0 0.0
          %1979 = vmatmul.mubr.f32.gmra.mrb[0].mxu0 %v1815
          %v1980 = vpop.f32.mrb[0].mxu0
          %v1981 = vadd.f32 %v1847, %v1980
          %v1982 = vpop.f32.mrb[0].mxu0
          %1983 = vmatprep.mubr.f32.mxu0 0.0
          %1984 = vmatmul.mubr.f32.gmra.mrb[0].mxu0 %v1816
          %v1985 = vpop.f32.mrb[0].mxu0
          %v1986 = vadd.f32 %v1847, %v1985
          %v1987 = vpop.f32.mrb[0].mxu0
          %1988 = vmatprep.mubr.f32.mxu0 0.0
          %1989 = vmatmul.mubr.f32.gmra.mrb[0].mxu0 %v1817
          %v1990 = vpop.f32.mrb[0].mxu0
          %v1991 = vadd.f32 %v1847, %v1990
          %v1992 = vpop.f32.mrb[0].mxu0
          %1993 = vmatprep.mubr.f32.mxu0 0.0
          %1994 = vmatmul.mubr.f32.gmra.mrb[0].mxu0 %v1818
          %v1995 = vpop.f32.mrb[0].mxu0
          %v1996 = vadd.f32 %v1847, %v1995
          %v1997 = vpop.f32.mrb[0].mxu0
          %1998 = vmatprep.mubr.f32.mxu0 0.0
          %1999 = vmatmul.mubr.f32.gmra.mrb[0].mxu0 %v1819
          %v2000 = vpop.f32.mrb[0].mxu0
          %v2001 = vadd.f32 %v1847, %v2000
          %v2002 = vpop.f32.mrb[0].mxu0
          %2003 = vmatprep.mubr.f32.mxu0 0.0
          %2004 = vmatmul.mubr.f32.gmra.mrb[0].mxu0 %v1820
          %v2005 = vpop.f32.mrb[0].mxu0
          %v2006 = vadd.f32 %v1847, %v2005
          %v2007 = vpop.f32.mrb[0].mxu0
          %2008 = vmatprep.mubr.f32.mxu0 0.0
          %2009 = vmatmul.mubr.f32.gmra.mrb[0].mxu0 %v1821
          %v2010 = vpop.f32.mrb[0].mxu0
          %v2011 = vadd.f32 %v1847, %v2010
          %v2012 = vpop.f32.mrb[0].mxu0
          %2013 = vmatprep.mubr.f32.mxu0 0.0
          %2014 = vmatmul.mubr.f32.gmra.mrb[0].mxu0 %v1822
          %v2015 = vpop.f32.mrb[0].mxu0
          %v2016 = vadd.f32 %v1847, %v2015
          %v2017 = vpop.f32.mrb[0].mxu0
          %2018 = vmatprep.mubr.f32.mxu0 0.0
          %2019 = vmatmul.mubr.f32.gmra.mrb[0].mxu0 %v1823
          %v2020 = vpop.f32.mrb[0].mxu0
          %v2021 = vadd.f32 %v1847, %v2020
          %v2022 = vpop.f32.mrb[0].mxu0
          %2023 = vmatprep.mubr.f32.mxu0 0.0
          %2024 = vmatmul.mubr.f32.gmra.mrb[0].mxu0 %v1824
          %v2025 = vpop.f32.mrb[0].mxu0
          %v2026 = vadd.f32 %v1847, %v2025
          %v2027 = vpop.f32.mrb[0].mxu0
          %2028 = vmatprep.mubr.f32.mxu0 0.0
          %2029 = vmatmul.mubr.f32.gmra.mrb[0].mxu0 %v1825
          %v2030 = vpop.f32.mrb[0].mxu0
          %v2031 = vadd.f32 %v1847, %v2030
          %v2032 = vpop.f32.mrb[0].mxu0
          %2033 = vdwg.mxu0
          %2034 = vst [vmem:[%s358] sm:$0xff] %v1916
          %2035 = vst [vmem:[%s358 + $0x8] sm:$0xff] %v1921
          %2036 = vst [vmem:[%s358 + $0x10] sm:$0xff] %v1926
          %2037 = vst [vmem:[%s358 + $0x18] sm:$0xff] %v1931
          %2038 = vst [vmem:[%s358 + $0x20] sm:$0xff] %v1936
          %2039 = vst [vmem:[%s358 + $0x28] sm:$0xff] %v1941
          %2040 = vst [vmem:[%s358 + $0x30] sm:$0xff] %v1946
          %2041 = vst [vmem:[%s358 + $0x38] sm:$0xff] %v1951
          %2042 = vst [vmem:[%s358 + $0x40] sm:$0xff] %v1956
          %2043 = vst [vmem:[%s358 + $0x48] sm:$0xff] %v1961
          %2044 = vst [vmem:[%s358 + $0x50] sm:$0xff] %v1966
          %2045 = vst [vmem:[%s358 + $0x58] sm:$0xff] %v1971
          %2046 = vst [vmem:[%s358 + $0x60] sm:$0xff] %v1976
          %2047 = vst [vmem:[%s358 + $0x68] sm:$0xff] %v1981
          %2048 = vst [vmem:[%s358 + $0x70] sm:$0xff] %v1986
          %2049 = vst [vmem:[%s358 + $0x78] sm:$0xff] %v1991
          %2050 = vst [vmem:[%s358 + $0x80] sm:$0xff] %v1996
          %2051 = vst [vmem:[%s358 + $0x88] sm:$0xff] %v2001
          %2052 = vst [vmem:[%s358 + $0x90] sm:$0xff] %v2006
          %2053 = vst [vmem:[%s358 + $0x98] sm:$0xff] %v2011
          %2054 = vst [vmem:[%s358 + $0xa0] sm:$0xff] %v2016
          %2055 = vst [vmem:[%s358 + $0xa8] sm:$0xff] %v2021
          %2056 = vst [vmem:[%s358 + $0xb0] sm:$0xff] %v2026
          %2057 = vst [vmem:[%s358 + $0xb8] sm:$0xff] %v2031
        $region72: #{tpu_custom_call.1} parent=47 // pred_fallthru
          _
        %s2058 = sand.u32 %s201, 1
        %s2059 = scalar_lea.sflag [#allocation6], %s2058
        %s2060 = sand.u32 %s201, 1
        %s2061 = smul.addr %s2060, 192
        %s2062 = scalar_lea.vmem [#allocation12], %s2061
        // Predicated region
        $region73: #{tpu_custom_call.1} parent=47 // pred_check
          %p2063 = pneg %p211
        $region74: #{tpu_custom_call.1} parent=47 // pred_check_branch
          %2065 = sbr.rel (%p2063) target = $region76
        $region75: #{tpu_custom_call.1} parent=47 // pred_region
          %s2066 = smul.u32 24, %s31
          %s2068 = ssub.s32 3072, 3072
          %2069 = vsyncadd %s2059, %s2068
          %s2070 = smul.addr %s2066, 128
          %s2071 = scalar_lea.hbm %s7, %s2070
          %s2072 = sshll.u32 %s2062, 4
          %s2073 = int_to_ptr.vmem [resolvable:$true] %s2072
          %2078 = dma.vmem_to_hbm [thread:$0]  %s2073, 3072, %s2071, %s2059, 128, 128, 8
        $region76: #{tpu_custom_call.1} parent=47 // pred_fallthru
          _
      $region48: #{tpu_custom_call.1} parent=5 // pred_fallthru
        _
      %p2079 = scmp.le.s32.totalorder 2, %s22
      // Predicated region
      $region77: #{tpu_custom_call.1} parent=5 // pred_check
        %p2080 = pneg %p2079
      $region78: #{tpu_custom_call.1} parent=5 // pred_check_branch
        %2082 = sbr.rel (%p2080) target = $region80
      $region79: #{tpu_custom_call.1} parent=5 // pred_region
        %s2083 = ssub.s32 %s22, 2
        // Predicated region
        $region81: #{tpu_custom_call.1} parent=79 // pred_check
          %p2084 = pneg %p217
        $region82: #{tpu_custom_call.1} parent=79 // pred_check_branch
          %2086 = sbr.rel (%p2084) target = $region84
        $region83: #{tpu_custom_call.1} parent=79 // pred_region
          %s2087 = sand.u32 %s202, 1
          %s2088 = scalar_lea.sflag [#allocation6], %s2087
          %s2089 = sand.u32 %s202, 1
          %s2090 = smul.addr %s2089, 192
          %s2091 = scalar_lea.vmem [#allocation12], %s2090
          %2092 = dma.done %s2088, 3072
        $region84: #{tpu_custom_call.1} parent=79 // pred_fallthru
          _
      $region80: #{tpu_custom_call.1} parent=5 // pred_fallthru
        _
    $region6: #{tpu_custom_call.1} parent=1 // loop_footer
      %s26 = sadd.s32 1, %s22
    $region7: #{tpu_custom_call.1} parent=1 // loop_footer_branch
      %21 = sbr.rel target = $region3
    $region8: #{tpu_custom_call.1} parent=1 // loop_exit
      _
    %2093 = vsyncpa [#allocation5], 1
    %s2094 = scalar_lea.sflag [#allocation5], 1
    %2095 = vsyncpa %s2094, 1
    %2096 = vsyncpa [#allocation8], 1
    %2097 = vsyncpa [#allocation11], 1
    %2098 = vsyncpa [#allocation6], 1
    %s2099 = scalar_lea.sflag [#allocation6], 1
    %2100 = vsyncpa %s2099, 1

</llo_original>
